<compile_context>
chip_gen: v6e
topology: v6e:2x2x1
jax: 0.10.0
libtpu: 0.0.40
codegen_flags: <defaults>
</compile_context>

<pallas_src>
import math

import jax
import jax.numpy as jnp
from jax.experimental import pallas as pl
from jax.experimental.pallas import tpu as pltpu

# ----------------------------- config ---------------------------------------
B = 2          # batch
S = 8          # sequence length
E = 32         # embedding_dim
H = 4          # num_heads
D = E // H     # head dim
N = B * S      # flattened token count
MLP = 64       # mlp_size
LN_EPS = 1e-5

# weight-slab row layout (all row offsets are multiples of 8)
_WQKV_R = 0                 # rows [  0, 32) cols [0, 96) : Wqkv^T (q cols pre-scaled)
_WO_R = E                   # rows [ 32, 64) cols [0, 32) : Wo^T
_W1_R = 2 * E               # rows [ 64, 96) cols [0, 64) : W1^T
_W2_R = 3 * E               # rows [ 96,160) cols [0, 32) : W2^T
_BIAS_R = 3 * E + MLP       # rows [160,176) cols [0, 16) : additive attention mask
_W_ROWS = _BIAS_R + N       # 176

# vector-slab (8, 128) row layout:
#   0 ln1_g   1 ln1_b   2 bqkv (q part pre-scaled)   3 bo
#   4 ln2_g   5 ln2_b   6 b1                          7 b2

# TODO(synk): dropout (mlp_dropout=0.1) is implemented as identity (eval mode).


def _layer_norm(x, g, b):
    # one-pass statistics; PyTorch LayerNorm = biased variance, eps inside rsqrt
    mu = jnp.mean(x, axis=-1, keepdims=True)
    ms = jnp.mean(x * x, axis=-1, keepdims=True)
    var = ms - mu * mu
    return (x - mu) * jax.lax.rsqrt(var + LN_EPS) * g + b


# ------------------- fused encoder-block kernel (single call) ----------------
def encoder_kernel(x_ref, vec_ref, w_ref, o_ref):
    x = x_ref[...]                                    # (N, E) f32
    vec = vec_ref[...]                                # (8, 128) packed 1-row params

    # ----- LN1 + fused QKV projection (q columns of Wqkv^T pre-scaled) ------
    h = _layer_norm(x, vec[0:1, :E], vec[1:2, :E])
    qkv = jnp.dot(h, w_ref[_WQKV_R:_WQKV_R + E, 0:3 * E],
                  preferred_element_type=jnp.float32) + vec[2:3, :3 * E]   # (N, 3E)

    # ----- multi-head self-attention over all B*S tokens at once ------------
    # cross-batch score entries are killed by a precomputed additive -1e30 mask
    att_bias = w_ref[_BIAS_R:_BIAS_R + N, 0:N]        # (N, N)
    wo = w_ref[_WO_R:_WO_R + E, 0:E]                  # (E, E) = Wo^T
    acc = jnp.zeros((N, E), jnp.float32)
    for hd in range(H):                               # static unroll, H=4
        q = qkv[:, hd * D:(hd + 1) * D]               # (N, D), 1/sqrt(D) folded in
        k = qkv[:, E + hd * D:E + (hd + 1) * D]
        v = qkv[:, 2 * E + hd * D:2 * E + (hd + 1) * D]
        # q @ k^T without an in-kernel transpose (contract the D axes)
        s = jax.lax.dot_general(q, k, (((1,), (1,)), ((), ())),
                                preferred_element_type=jnp.float32)        # (N, N)
        s = s + att_bias
        s = s - jnp.max(s, axis=-1, keepdims=True)
        p = jnp.exp(s)
        denom = jnp.sum(p, axis=-1, keepdims=True)
        r = pl.reciprocal(denom, approx=True)         # EUP slot
        r = r * (2.0 - denom * r)                     # one Newton-Raphson step
        p = p * r
        oh = jnp.dot(p, v, preferred_element_type=jnp.float32)             # (N, D)
        # head-concat folded into an accumulated output projection (no concat)
        acc = acc + jnp.dot(oh, wo[hd * D:(hd + 1) * D, :],
                            preferred_element_type=jnp.float32)
    x = acc + vec[3:4, :E] + x                        # + bo, residual 1

    # ----- LN2 + MLP (exact erf-GELU, matches nn.GELU default) --------------
    h2 = _layer_norm(x, vec[4:5, :E], vec[5:6, :E])
    u = jnp.dot(h2, w_ref[_W1_R:_W1_R + E, 0:MLP],
                preferred_element_type=jnp.float32) + vec[6:7, :MLP]        # (N, MLP)
    u = 0.5 * u * (1.0 + jax.lax.erf(u * (1.0 / math.sqrt(2.0))))
    z = jnp.dot(u, w_ref[_W2_R:_W2_R + MLP, 0:E],
                preferred_element_type=jnp.float32) + vec[7:8, :E]          # (N, E)
    o_ref[...] = (z + x).astype(o_ref.dtype)          # residual 2


# ----------------------- one-time parameter packing --------------------------
def prepare_params(p):
    """Pack weights/biases into two slabs (runs once, outside the jit path)."""
    scale = 1.0 / math.sqrt(D)
    wqkv_t = p["wqkv"].T.astype(jnp.float32)          # (E, 3E)
    wqkv_t = wqkv_t.at[:, :E].multiply(scale)         # fold 1/sqrt(D) into Wq
    bqkv = p["bqkv"].astype(jnp.float32).at[:, :E].multiply(scale)

    vec = jnp.zeros((8, 128), jnp.float32)
    vec = vec.at[0, :E].set(p["ln1_g"][0])
    vec = vec.at[1, :E].set(p["ln1_b"][0])
    vec = vec.at[2, :3 * E].set(bqkv[0])
    vec = vec.at[3, :E].set(p["bo"][0])
    vec = vec.at[4, :E].set(p["ln2_g"][0])
    vec = vec.at[5, :E].set(p["ln2_b"][0])
    vec = vec.at[6, :MLP].set(p["b1"][0])
    vec = vec.at[7, :E].set(p["b2"][0])

    w = jnp.zeros((_W_ROWS, 128), jnp.float32)
    w = w.at[_WQKV_R:_WQKV_R + E, 0:3 * E].set(wqkv_t)
    w = w.at[_WO_R:_WO_R + E, 0:E].set(p["wo"].T)
    w = w.at[_W1_R:_W1_R + E, 0:MLP].set(p["w1"].T)
    w = w.at[_W2_R:_W2_R + MLP, 0:E].set(p["w2"].T)
    # block-diagonal (same-batch) additive attention mask
    row_b = jnp.arange(N)[:, None] // S
    col_b = jnp.arange(N)[None, :] // S
    bias = jnp.where(row_b == col_b, 0.0, -1e30).astype(jnp.float32)
    w = w.at[_BIAS_R:_BIAS_R + N, 0:N].set(bias)
    return vec, w


# ----------------------------- wrapper ---------------------------------------
def transformer_encoder_block(x, vec_slab, w_slab):
    xf = x.reshape(N, E)                              # flatten tokens (free)
    out = pl.pallas_call(
        encoder_kernel,
        out_shape=jax.ShapeDtypeStruct((N, E), x.dtype),
        in_specs=[
            pl.BlockSpec(memory_space=pltpu.MemorySpace.VMEM),   # x (tokens)
            pl.BlockSpec(memory_space=pltpu.MemorySpace.VMEM),   # packed 1-row params
            pl.BlockSpec(memory_space=pltpu.MemorySpace.VMEM),   # packed weights + mask
        ],
        out_specs=pl.BlockSpec(memory_space=pltpu.MemorySpace.VMEM),
    )(xf, vec_slab, w_slab)
    return out.reshape(B, S, E)


# -------------------------- pure-JAX reference --------------------------------
def reference(x, p):
    def ln(v, g, b):
        mu = jnp.mean(v, axis=-1, keepdims=True)
        var = jnp.mean((v - mu) ** 2, axis=-1, keepdims=True)
        return (v - mu) / jnp.sqrt(var + LN_EPS) * g + b

    h = ln(x, p["ln1_g"][0], p["ln1_b"][0])
    qkv = h @ p["wqkv"].T + p["bqkv"][0]
    q, k, v = jnp.split(qkv, 3, axis=-1)
    q = q.reshape(B, S, H, D).transpose(0, 2, 1, 3)
    k = k.reshape(B, S, H, D).transpose(0, 2, 1, 3)
    v = v.reshape(B, S, H, D).transpose(0, 2, 1, 3)
    s = jnp.einsum("bhqd,bhkd->bhqk", q, k) / math.sqrt(D)
    a = jax.nn.softmax(s, axis=-1)
    o = jnp.einsum("bhqk,bhkd->bhqd", a, v).transpose(0, 2, 1, 3).reshape(B, S, E)
    o = o @ p["wo"].T + p["bo"][0]
    x = o + x

    h = ln(x, p["ln2_g"][0], p["ln2_b"][0])
    u = h @ p["w1"].T + p["b1"][0]
    u = 0.5 * u * (1.0 + jax.lax.erf(u / math.sqrt(2.0)))
    z = u @ p["w2"].T + p["b2"][0]
    return z + x


# ------------------------------- main -----------------------------------------
if __name__ == "__main__":
    key = jax.random.PRNGKey(0)
    keys = jax.random.split(key, 8)

    x = jax.random.normal(keys[0], (B, S, E), dtype=jnp.float32)

    params = {
        "ln1_g": jnp.ones((1, E), jnp.float32),
        "ln1_b": jnp.zeros((1, E), jnp.float32),
        "wqkv": jax.random.normal(keys[1], (3 * E, E), jnp.float32) * 0.05,
        "bqkv": jax.random.normal(keys[2], (1, 3 * E), jnp.float32) * 0.01,
        "wo": jax.random.normal(keys[3], (E, E), jnp.float32) * 0.05,
        "bo": jax.random.normal(keys[4], (1, E), jnp.float32) * 0.01,
        "ln2_g": jnp.ones((1, E), jnp.float32),
        "ln2_b": jnp.zeros((1, E), jnp.float32),
        "w1": jax.random.normal(keys[5], (MLP, E), jnp.float32) * 0.05,
        "b1": jax.random.normal(keys[6], (1, MLP), jnp.float32) * 0.01,
        "w2": jax.random.normal(keys[7], (E, MLP), jnp.float32) * 0.05,
        "b2": jnp.zeros((1, E), jnp.float32),
    }

    # one-time packing / transposing / scale-folding (outside the traced path)
    vec_slab, w_slab = prepare_params(params)

    out = jax.jit(transformer_encoder_block)(x, vec_slab, w_slab)
    out = jax.block_until_ready(out)

    ref = reference(x, params)
    assert out.shape == (B, S, E)
    assert jnp.allclose(out, ref, atol=1e-4, rtol=1e-4), (
        float(jnp.max(jnp.abs(out - ref))))

    print("KERNEL_OK")
</pallas_src>

<mosaic_0001>
module attributes {stable_mosaic.version = 11 : i64} {
  func.func @encoder_kernel(%arg0: memref<16x32xf32, #tpu.memory_space<vmem>>, %arg1: memref<8x128xf32, #tpu.memory_space<vmem>>, %arg2: memref<176x128xf32, #tpu.memory_space<vmem>>, %arg3: memref<16x32xf32, #tpu.memory_space<vmem>>) attributes {dimension_semantics = [], scalar_prefetch = 0 : i64, scratch_operands = 0 : i64, tpu.core_type = #tpu.core_type<tc>} {
    %c0 = arith.constant 0 : index
    %c0_0 = arith.constant 0 : index
    %0 = vector.load %arg0[%c0, %c0_0] : memref<16x32xf32, #tpu.memory_space<vmem>>, vector<16x32xf32>
    %c0_1 = arith.constant 0 : index
    %c0_2 = arith.constant 0 : index
    %1 = vector.load %arg1[%c0_1, %c0_2] : memref<8x128xf32, #tpu.memory_space<vmem>>, vector<8x128xf32>
    %2 = vector.extract_strided_slice %1 {offsets = [0, 0], sizes = [1, 32], strides = [1, 1]} : vector<8x128xf32> to vector<1x32xf32>
    %3 = vector.extract_strided_slice %1 {offsets = [1, 0], sizes = [1, 32], strides = [1, 1]} : vector<8x128xf32> to vector<1x32xf32>
    %cst = arith.constant dense<0.000000e+00> : vector<16xf32>
    %4 = vector.multi_reduction <add>, %0, %cst [1] : vector<16x32xf32> to vector<16xf32>
    %5 = vector.shape_cast %4 : vector<16xf32> to vector<16x1xf32>
    %cst_3 = arith.constant 3.200000e+01 : f32
    %6 = vector.broadcast %cst_3 : f32 to vector<16x1xf32>
    %7 = arith.divf %5, %6 : vector<16x1xf32>
    %8 = arith.mulf %0, %0 : vector<16x32xf32>
    %cst_4 = arith.constant dense<0.000000e+00> : vector<16xf32>
    %9 = vector.multi_reduction <add>, %8, %cst_4 [1] : vector<16x32xf32> to vector<16xf32>
    %10 = vector.shape_cast %9 : vector<16xf32> to vector<16x1xf32>
    %cst_5 = arith.constant 3.200000e+01 : f32
    %11 = vector.broadcast %cst_5 : f32 to vector<16x1xf32>
    %12 = arith.divf %10, %11 : vector<16x1xf32>
    %13 = arith.mulf %7, %7 : vector<16x1xf32>
    %14 = arith.subf %12, %13 : vector<16x1xf32>
    %15 = vector.broadcast %7 : vector<16x1xf32> to vector<16x32xf32>
    %16 = arith.subf %0, %15 : vector<16x32xf32>
    %cst_6 = arith.constant 9.99999974E-6 : f32
    %17 = vector.broadcast %cst_6 : f32 to vector<16x1xf32>
    %18 = arith.addf %14, %17 : vector<16x1xf32>
    %19 = math.rsqrt %18 : vector<16x1xf32>
    %20 = vector.broadcast %19 : vector<16x1xf32> to vector<16x32xf32>
    %21 = arith.mulf %16, %20 : vector<16x32xf32>
    %22 = vector.broadcast %2 : vector<1x32xf32> to vector<16x32xf32>
    %23 = arith.mulf %21, %22 : vector<16x32xf32>
    %24 = vector.broadcast %3 : vector<1x32xf32> to vector<16x32xf32>
    %25 = arith.addf %23, %24 : vector<16x32xf32>
    %c0_7 = arith.constant 0 : index
    %c0_8 = arith.constant 0 : index
    %26 = vector.load %arg2[%c0_7, %c0_8] : memref<176x128xf32, #tpu.memory_space<vmem>>, vector<32x96xf32>
    %cst_9 = arith.constant dense<0.000000e+00> : vector<16x96xf32>
    %27 = tpu.matmul %25, %26, %cst_9 {dimension_numbers = #tpu.dot_dimension_numbers<[1], [0], [0], [1], [0, 0, 1, 1], [], []>} : vector<16x32xf32>, vector<32x96xf32>, vector<16x96xf32> -> vector<16x96xf32>
    %28 = vector.extract_strided_slice %1 {offsets = [2, 0], sizes = [1, 96], strides = [1, 1]} : vector<8x128xf32> to vector<1x96xf32>
    %29 = vector.broadcast %28 : vector<1x96xf32> to vector<16x96xf32>
    %30 = arith.addf %27, %29 : vector<16x96xf32>
    %c160 = arith.constant 160 : index
    %c0_10 = arith.constant 0 : index
    %31 = vector.load %arg2[%c160, %c0_10] : memref<176x128xf32, #tpu.memory_space<vmem>>, vector<16x16xf32>
    %c32 = arith.constant 32 : index
    %c0_11 = arith.constant 0 : index
    %32 = vector.load %arg2[%c32, %c0_11] : memref<176x128xf32, #tpu.memory_space<vmem>>, vector<32x32xf32>
    %cst_12 = arith.constant 0.000000e+00 : f32
    %33 = vector.broadcast %cst_12 : f32 to vector<16x32xf32>
    %34 = vector.extract_strided_slice %30 {offsets = [0, 0], sizes = [16, 8], strides = [1, 1]} : vector<16x96xf32> to vector<16x8xf32>
    %35 = vector.extract_strided_slice %30 {offsets = [0, 32], sizes = [16, 8], strides = [1, 1]} : vector<16x96xf32> to vector<16x8xf32>
    %36 = vector.extract_strided_slice %30 {offsets = [0, 64], sizes = [16, 8], strides = [1, 1]} : vector<16x96xf32> to vector<16x8xf32>
    %cst_13 = arith.constant dense<0.000000e+00> : vector<16x16xf32>
    %37 = tpu.matmul %34, %35, %cst_13 {dimension_numbers = #tpu.dot_dimension_numbers<[1], [1], [0], [0], [0, 0, 1, 0], [], []>} : vector<16x8xf32>, vector<16x8xf32>, vector<16x16xf32> -> vector<16x16xf32>
    %38 = arith.addf %37, %31 : vector<16x16xf32>
    %cst_14 = arith.constant dense<0xFF800000> : vector<16xf32>
    %39 = vector.multi_reduction <maximumf>, %38, %cst_14 [1] : vector<16x16xf32> to vector<16xf32>
    %40 = vector.shape_cast %39 : vector<16xf32> to vector<16x1xf32>
    %41 = vector.broadcast %40 : vector<16x1xf32> to vector<16x16xf32>
    %42 = arith.subf %38, %41 : vector<16x16xf32>
    %43 = math.exp %42 : vector<16x16xf32>
    %cst_15 = arith.constant dense<0.000000e+00> : vector<16xf32>
    %44 = vector.multi_reduction <add>, %43, %cst_15 [1] : vector<16x16xf32> to vector<16xf32>
    %45 = vector.shape_cast %44 : vector<16xf32> to vector<16x1xf32>
    %46 = tpu.reciprocal %45 {approx = true} : vector<16x1xf32> -> vector<16x1xf32>
    %47 = arith.mulf %45, %46 : vector<16x1xf32>
    %cst_16 = arith.constant 2.000000e+00 : f32
    %48 = vector.broadcast %cst_16 : f32 to vector<16x1xf32>
    %49 = arith.subf %48, %47 : vector<16x1xf32>
    %50 = arith.mulf %46, %49 : vector<16x1xf32>
    %51 = vector.broadcast %50 : vector<16x1xf32> to vector<16x16xf32>
    %52 = arith.mulf %43, %51 : vector<16x16xf32>
    %cst_17 = arith.constant dense<0.000000e+00> : vector<16x8xf32>
    %53 = tpu.matmul %52, %36, %cst_17 {dimension_numbers = #tpu.dot_dimension_numbers<[1], [0], [0], [1], [0, 0, 1, 1], [], []>} : vector<16x16xf32>, vector<16x8xf32>, vector<16x8xf32> -> vector<16x8xf32>
    %54 = vector.extract_strided_slice %32 {offsets = [0, 0], sizes = [8, 32], strides = [1, 1]} : vector<32x32xf32> to vector<8x32xf32>
    %cst_18 = arith.constant dense<0.000000e+00> : vector<16x32xf32>
    %55 = tpu.matmul %53, %54, %cst_18 {dimension_numbers = #tpu.dot_dimension_numbers<[1], [0], [0], [1], [0, 0, 1, 1], [], []>} : vector<16x8xf32>, vector<8x32xf32>, vector<16x32xf32> -> vector<16x32xf32>
    %56 = arith.addf %33, %55 : vector<16x32xf32>
    %57 = vector.extract_strided_slice %30 {offsets = [0, 8], sizes = [16, 8], strides = [1, 1]} : vector<16x96xf32> to vector<16x8xf32>
    %58 = vector.extract_strided_slice %30 {offsets = [0, 40], sizes = [16, 8], strides = [1, 1]} : vector<16x96xf32> to vector<16x8xf32>
    %59 = vector.extract_strided_slice %30 {offsets = [0, 72], sizes = [16, 8], strides = [1, 1]} : vector<16x96xf32> to vector<16x8xf32>
    %cst_19 = arith.constant dense<0.000000e+00> : vector<16x16xf32>
    %60 = tpu.matmul %57, %58, %cst_19 {dimension_numbers = #tpu.dot_dimension_numbers<[1], [1], [0], [0], [0, 0, 1, 0], [], []>} : vector<16x8xf32>, vector<16x8xf32>, vector<16x16xf32> -> vector<16x16xf32>
    %61 = arith.addf %60, %31 : vector<16x16xf32>
    %cst_20 = arith.constant dense<0xFF800000> : vector<16xf32>
    %62 = vector.multi_reduction <maximumf>, %61, %cst_20 [1] : vector<16x16xf32> to vector<16xf32>
    %63 = vector.shape_cast %62 : vector<16xf32> to vector<16x1xf32>
    %64 = vector.broadcast %63 : vector<16x1xf32> to vector<16x16xf32>
    %65 = arith.subf %61, %64 : vector<16x16xf32>
    %66 = math.exp %65 : vector<16x16xf32>
    %cst_21 = arith.constant dense<0.000000e+00> : vector<16xf32>
    %67 = vector.multi_reduction <add>, %66, %cst_21 [1] : vector<16x16xf32> to vector<16xf32>
    %68 = vector.shape_cast %67 : vector<16xf32> to vector<16x1xf32>
    %69 = tpu.reciprocal %68 {approx = true} : vector<16x1xf32> -> vector<16x1xf32>
    %70 = arith.mulf %68, %69 : vector<16x1xf32>
    %cst_22 = arith.constant 2.000000e+00 : f32
    %71 = vector.broadcast %cst_22 : f32 to vector<16x1xf32>
    %72 = arith.subf %71, %70 : vector<16x1xf32>
    %73 = arith.mulf %69, %72 : vector<16x1xf32>
    %74 = vector.broadcast %73 : vector<16x1xf32> to vector<16x16xf32>
    %75 = arith.mulf %66, %74 : vector<16x16xf32>
    %cst_23 = arith.constant dense<0.000000e+00> : vector<16x8xf32>
    %76 = tpu.matmul %75, %59, %cst_23 {dimension_numbers = #tpu.dot_dimension_numbers<[1], [0], [0], [1], [0, 0, 1, 1], [], []>} : vector<16x16xf32>, vector<16x8xf32>, vector<16x8xf32> -> vector<16x8xf32>
    %77 = vector.extract_strided_slice %32 {offsets = [8, 0], sizes = [8, 32], strides = [1, 1]} : vector<32x32xf32> to vector<8x32xf32>
    %cst_24 = arith.constant dense<0.000000e+00> : vector<16x32xf32>
    %78 = tpu.matmul %76, %77, %cst_24 {dimension_numbers = #tpu.dot_dimension_numbers<[1], [0], [0], [1], [0, 0, 1, 1], [], []>} : vector<16x8xf32>, vector<8x32xf32>, vector<16x32xf32> -> vector<16x32xf32>
    %79 = arith.addf %56, %78 : vector<16x32xf32>
    %80 = vector.extract_strided_slice %30 {offsets = [0, 16], sizes = [16, 8], strides = [1, 1]} : vector<16x96xf32> to vector<16x8xf32>
    %81 = vector.extract_strided_slice %30 {offsets = [0, 48], sizes = [16, 8], strides = [1, 1]} : vector<16x96xf32> to vector<16x8xf32>
    %82 = vector.extract_strided_slice %30 {offsets = [0, 80], sizes = [16, 8], strides = [1, 1]} : vector<16x96xf32> to vector<16x8xf32>
    %cst_25 = arith.constant dense<0.000000e+00> : vector<16x16xf32>
    %83 = tpu.matmul %80, %81, %cst_25 {dimension_numbers = #tpu.dot_dimension_numbers<[1], [1], [0], [0], [0, 0, 1, 0], [], []>} : vector<16x8xf32>, vector<16x8xf32>, vector<16x16xf32> -> vector<16x16xf32>
    %84 = arith.addf %83, %31 : vector<16x16xf32>
    %cst_26 = arith.constant dense<0xFF800000> : vector<16xf32>
    %85 = vector.multi_reduction <maximumf>, %84, %cst_26 [1] : vector<16x16xf32> to vector<16xf32>
    %86 = vector.shape_cast %85 : vector<16xf32> to vector<16x1xf32>
    %87 = vector.broadcast %86 : vector<16x1xf32> to vector<16x16xf32>
    %88 = arith.subf %84, %87 : vector<16x16xf32>
    %89 = math.exp %88 : vector<16x16xf32>
    %cst_27 = arith.constant dense<0.000000e+00> : vector<16xf32>
    %90 = vector.multi_reduction <add>, %89, %cst_27 [1] : vector<16x16xf32> to vector<16xf32>
    %91 = vector.shape_cast %90 : vector<16xf32> to vector<16x1xf32>
    %92 = tpu.reciprocal %91 {approx = true} : vector<16x1xf32> -> vector<16x1xf32>
    %93 = arith.mulf %91, %92 : vector<16x1xf32>
    %cst_28 = arith.constant 2.000000e+00 : f32
    %94 = vector.broadcast %cst_28 : f32 to vector<16x1xf32>
    %95 = arith.subf %94, %93 : vector<16x1xf32>
    %96 = arith.mulf %92, %95 : vector<16x1xf32>
    %97 = vector.broadcast %96 : vector<16x1xf32> to vector<16x16xf32>
    %98 = arith.mulf %89, %97 : vector<16x16xf32>
    %cst_29 = arith.constant dense<0.000000e+00> : vector<16x8xf32>
    %99 = tpu.matmul %98, %82, %cst_29 {dimension_numbers = #tpu.dot_dimension_numbers<[1], [0], [0], [1], [0, 0, 1, 1], [], []>} : vector<16x16xf32>, vector<16x8xf32>, vector<16x8xf32> -> vector<16x8xf32>
    %100 = vector.extract_strided_slice %32 {offsets = [16, 0], sizes = [8, 32], strides = [1, 1]} : vector<32x32xf32> to vector<8x32xf32>
    %cst_30 = arith.constant dense<0.000000e+00> : vector<16x32xf32>
    %101 = tpu.matmul %99, %100, %cst_30 {dimension_numbers = #tpu.dot_dimension_numbers<[1], [0], [0], [1], [0, 0, 1, 1], [], []>} : vector<16x8xf32>, vector<8x32xf32>, vector<16x32xf32> -> vector<16x32xf32>
    %102 = arith.addf %79, %101 : vector<16x32xf32>
    %103 = vector.extract_strided_slice %30 {offsets = [0, 24], sizes = [16, 8], strides = [1, 1]} : vector<16x96xf32> to vector<16x8xf32>
    %104 = vector.extract_strided_slice %30 {offsets = [0, 56], sizes = [16, 8], strides = [1, 1]} : vector<16x96xf32> to vector<16x8xf32>
    %105 = vector.extract_strided_slice %30 {offsets = [0, 88], sizes = [16, 8], strides = [1, 1]} : vector<16x96xf32> to vector<16x8xf32>
    %cst_31 = arith.constant dense<0.000000e+00> : vector<16x16xf32>
    %106 = tpu.matmul %103, %104, %cst_31 {dimension_numbers = #tpu.dot_dimension_numbers<[1], [1], [0], [0], [0, 0, 1, 0], [], []>} : vector<16x8xf32>, vector<16x8xf32>, vector<16x16xf32> -> vector<16x16xf32>
    %107 = arith.addf %106, %31 : vector<16x16xf32>
    %cst_32 = arith.constant dense<0xFF800000> : vector<16xf32>
    %108 = vector.multi_reduction <maximumf>, %107, %cst_32 [1] : vector<16x16xf32> to vector<16xf32>
    %109 = vector.shape_cast %108 : vector<16xf32> to vector<16x1xf32>
    %110 = vector.broadcast %109 : vector<16x1xf32> to vector<16x16xf32>
    %111 = arith.subf %107, %110 : vector<16x16xf32>
    %112 = math.exp %111 : vector<16x16xf32>
    %cst_33 = arith.constant dense<0.000000e+00> : vector<16xf32>
    %113 = vector.multi_reduction <add>, %112, %cst_33 [1] : vector<16x16xf32> to vector<16xf32>
    %114 = vector.shape_cast %113 : vector<16xf32> to vector<16x1xf32>
    %115 = tpu.reciprocal %114 {approx = true} : vector<16x1xf32> -> vector<16x1xf32>
    %116 = arith.mulf %114, %115 : vector<16x1xf32>
    %cst_34 = arith.constant 2.000000e+00 : f32
    %117 = vector.broadcast %cst_34 : f32 to vector<16x1xf32>
    %118 = arith.subf %117, %116 : vector<16x1xf32>
    %119 = arith.mulf %115, %118 : vector<16x1xf32>
    %120 = vector.broadcast %119 : vector<16x1xf32> to vector<16x16xf32>
    %121 = arith.mulf %112, %120 : vector<16x16xf32>
    %cst_35 = arith.constant dense<0.000000e+00> : vector<16x8xf32>
    %122 = tpu.matmul %121, %105, %cst_35 {dimension_numbers = #tpu.dot_dimension_numbers<[1], [0], [0], [1], [0, 0, 1, 1], [], []>} : vector<16x16xf32>, vector<16x8xf32>, vector<16x8xf32> -> vector<16x8xf32>
    %123 = vector.extract_strided_slice %32 {offsets = [24, 0], sizes = [8, 32], strides = [1, 1]} : vector<32x32xf32> to vector<8x32xf32>
    %cst_36 = arith.constant dense<0.000000e+00> : vector<16x32xf32>
    %124 = tpu.matmul %122, %123, %cst_36 {dimension_numbers = #tpu.dot_dimension_numbers<[1], [0], [0], [1], [0, 0, 1, 1], [], []>} : vector<16x8xf32>, vector<8x32xf32>, vector<16x32xf32> -> vector<16x32xf32>
    %125 = arith.addf %102, %124 : vector<16x32xf32>
    %126 = vector.extract_strided_slice %1 {offsets = [3, 0], sizes = [1, 32], strides = [1, 1]} : vector<8x128xf32> to vector<1x32xf32>
    %127 = vector.broadcast %126 : vector<1x32xf32> to vector<16x32xf32>
    %128 = arith.addf %125, %127 : vector<16x32xf32>
    %129 = arith.addf %128, %0 : vector<16x32xf32>
    %130 = vector.extract_strided_slice %1 {offsets = [4, 0], sizes = [1, 32], strides = [1, 1]} : vector<8x128xf32> to vector<1x32xf32>
    %131 = vector.extract_strided_slice %1 {offsets = [5, 0], sizes = [1, 32], strides = [1, 1]} : vector<8x128xf32> to vector<1x32xf32>
    %cst_37 = arith.constant dense<0.000000e+00> : vector<16xf32>
    %132 = vector.multi_reduction <add>, %129, %cst_37 [1] : vector<16x32xf32> to vector<16xf32>
    %133 = vector.shape_cast %132 : vector<16xf32> to vector<16x1xf32>
    %cst_38 = arith.constant 3.200000e+01 : f32
    %134 = vector.broadcast %cst_38 : f32 to vector<16x1xf32>
    %135 = arith.divf %133, %134 : vector<16x1xf32>
    %136 = arith.mulf %129, %129 : vector<16x32xf32>
    %cst_39 = arith.constant dense<0.000000e+00> : vector<16xf32>
    %137 = vector.multi_reduction <add>, %136, %cst_39 [1] : vector<16x32xf32> to vector<16xf32>
    %138 = vector.shape_cast %137 : vector<16xf32> to vector<16x1xf32>
    %cst_40 = arith.constant 3.200000e+01 : f32
    %139 = vector.broadcast %cst_40 : f32 to vector<16x1xf32>
    %140 = arith.divf %138, %139 : vector<16x1xf32>
    %141 = arith.mulf %135, %135 : vector<16x1xf32>
    %142 = arith.subf %140, %141 : vector<16x1xf32>
    %143 = vector.broadcast %135 : vector<16x1xf32> to vector<16x32xf32>
    %144 = arith.subf %129, %143 : vector<16x32xf32>
    %cst_41 = arith.constant 9.99999974E-6 : f32
    %145 = vector.broadcast %cst_41 : f32 to vector<16x1xf32>
    %146 = arith.addf %142, %145 : vector<16x1xf32>
    %147 = math.rsqrt %146 : vector<16x1xf32>
    %148 = vector.broadcast %147 : vector<16x1xf32> to vector<16x32xf32>
    %149 = arith.mulf %144, %148 : vector<16x32xf32>
    %150 = vector.broadcast %130 : vector<1x32xf32> to vector<16x32xf32>
    %151 = arith.mulf %149, %150 : vector<16x32xf32>
    %152 = vector.broadcast %131 : vector<1x32xf32> to vector<16x32xf32>
    %153 = arith.addf %151, %152 : vector<16x32xf32>
    %c64 = arith.constant 64 : index
    %c0_42 = arith.constant 0 : index
    %154 = vector.load %arg2[%c64, %c0_42] : memref<176x128xf32, #tpu.memory_space<vmem>>, vector<32x64xf32>
    %cst_43 = arith.constant dense<0.000000e+00> : vector<16x64xf32>
    %155 = tpu.matmul %153, %154, %cst_43 {dimension_numbers = #tpu.dot_dimension_numbers<[1], [0], [0], [1], [0, 0, 1, 1], [], []>} : vector<16x32xf32>, vector<32x64xf32>, vector<16x64xf32> -> vector<16x64xf32>
    %156 = vector.extract_strided_slice %1 {offsets = [6, 0], sizes = [1, 64], strides = [1, 1]} : vector<8x128xf32> to vector<1x64xf32>
    %157 = vector.broadcast %156 : vector<1x64xf32> to vector<16x64xf32>
    %158 = arith.addf %155, %157 : vector<16x64xf32>
    %cst_44 = arith.constant 5.000000e-01 : f32
    %159 = vector.broadcast %cst_44 : f32 to vector<16x64xf32>
    %160 = arith.mulf %159, %158 : vector<16x64xf32>
    %cst_45 = arith.constant 0.707106769 : f32
    %161 = vector.broadcast %cst_45 : f32 to vector<16x64xf32>
    %162 = arith.mulf %158, %161 : vector<16x64xf32>
    %163 = math.erf %162 : vector<16x64xf32>
    %cst_46 = arith.constant 1.000000e+00 : f32
    %164 = vector.broadcast %cst_46 : f32 to vector<16x64xf32>
    %165 = arith.addf %164, %163 : vector<16x64xf32>
    %166 = arith.mulf %160, %165 : vector<16x64xf32>
    %c96 = arith.constant 96 : index
    %c0_47 = arith.constant 0 : index
    %167 = vector.load %arg2[%c96, %c0_47] : memref<176x128xf32, #tpu.memory_space<vmem>>, vector<64x32xf32>
    %cst_48 = arith.constant dense<0.000000e+00> : vector<16x32xf32>
    %168 = tpu.matmul %166, %167, %cst_48 {dimension_numbers = #tpu.dot_dimension_numbers<[1], [0], [0], [1], [0, 0, 1, 1], [], []>} : vector<16x64xf32>, vector<64x32xf32>, vector<16x32xf32> -> vector<16x32xf32>
    %169 = vector.extract_strided_slice %1 {offsets = [7, 0], sizes = [1, 32], strides = [1, 1]} : vector<8x128xf32> to vector<1x32xf32>
    %170 = vector.broadcast %169 : vector<1x32xf32> to vector<16x32xf32>
    %171 = arith.addf %168, %170 : vector<16x32xf32>
    %172 = arith.addf %171, %129 : vector<16x32xf32>
    %c0_49 = arith.constant 0 : index
    %c0_50 = arith.constant 0 : index
    %173 = vector.load %arg3[%c0_49, %c0_50] : memref<16x32xf32, #tpu.memory_space<vmem>>, vector<16x32xf32>
    tpu.vector_store %arg3[%c0_49, %c0_50], %172 {strides = array<i32>} : memref<16x32xf32, #tpu.memory_space<vmem>>, vector<16x32xf32>,
    return
  }
}

</mosaic_0001>

<llo_original>
// kernel: transformer_encoder_block.1
$region0: #{transformer_encoder_block.1}
  #allocation0 [shape = 'u32[]', space=smem, size = 0x4, offset = 0x4, fixed_abs, tag = 'smem constant byte address 0x4 - core index']
  #allocation1 [shape = 'u32[144,128]{1,0:T(1,128)}', space=vmem, size = 0x12000, scoped, tag = 'internal scratch']
  %s0 = inlined_call_operand.hbm [shape: f32[16,32], index: 0, kind: input, shape index: {}]
  %s1 = inlined_call_operand.hbm [shape: f32[8,128], index: 1, kind: input, shape index: {}]
  %s2 = inlined_call_operand.hbm [shape: f32[176,128], index: 2, kind: input, shape index: {}]
  %s3 = inlined_call_operand.hbm [shape: f32[16,32], index: 3, kind: output, shape index: {}]
  %s4 = sld [smem:[#allocation0]]
  $region34: #{transformer_encoder_block.1} parent=0
    _
  %s6 = ssub.s32 1, %s4
  %s7 = scalar_select 0, %s6, %s4
  $region1: #{transformer_encoder_block.1} parent=0
    #allocation2 [shape = 'u8[8192]{0}', space=vmem, size = 0x2000, scoped, tag = 'input window, operand 0, single buffered']
    #allocation3 [shape = 's32[1]{0}', space=sflag, size = 0x4, scoped, tag = 'scoped memory for transformer_encoder_block.1']
    #allocation4 [shape = 's32[1]{0}', space=sflag, size = 0x4, scoped, tag = 'scoped memory for transformer_encoder_block.1']
    #allocation5 [shape = 'u8[4096]{0}', space=vmem, size = 0x1000, scoped, tag = 'input window, operand 1, single buffered']
    #allocation6 [shape = 's32[1]{0}', space=sflag, size = 0x4, scoped, tag = 'scoped memory for transformer_encoder_block.1']
    #allocation7 [shape = 'u8[90112]{0}', space=vmem, size = 0x16000, scoped, tag = 'input window, operand 2, single buffered']
    #allocation8 [shape = 'u8[8192]{0}', space=vmem, size = 0x2000, scoped, tag = 'output window, operand 0, single buffered']
    %8 = vsyncpa [#allocation3], 0
    %9 = vsyncpa [#allocation6], 0
    %10 = vsyncpa [#allocation4], 0
    // Predicated region
    $region2: #{transformer_encoder_block.1} parent=1 // pred_check
      _
    $region3: #{transformer_encoder_block.1} parent=1 // pred_check_branch
      %12 = sbr.rel (0) target = $region5
    $region4: #{transformer_encoder_block.1} parent=1 // pred_region
      %s14 = ssub.s32 256, 256
      %15 = vsyncadd [#allocation3], %s14
      %s16 = sshll.u32 [#allocation2], 4
      %s17 = int_to_ptr.vmem [resolvable:$true] %s16
      %22 = dma.hbm_to_vmem [thread:$0]  %s0, 256, %s17, [#allocation3], 128, 128, 8
    $region5: #{transformer_encoder_block.1} parent=1 // pred_fallthru
      _
    // Predicated region
    $region6: #{transformer_encoder_block.1} parent=1 // pred_check
      _
    $region7: #{transformer_encoder_block.1} parent=1 // pred_check_branch
      %24 = sbr.rel (0) target = $region9
    $region8: #{transformer_encoder_block.1} parent=1 // pred_region
      %s26 = ssub.s32 128, 128
      %27 = vsyncadd [#allocation6], %s26
      %s29 = sshll.u32 [#allocation5], 4
      %s30 = int_to_ptr.vmem [resolvable:$true] %s29
      %32 = dma.hbm_to_vmem [thread:$0]  %s1, 128, %s30, [#allocation6]
    $region9: #{transformer_encoder_block.1} parent=1 // pred_fallthru
      _
    // Predicated region
    $region10: #{transformer_encoder_block.1} parent=1 // pred_check
      _
    $region11: #{transformer_encoder_block.1} parent=1 // pred_check_branch
      %34 = sbr.rel (0) target = $region13
    $region12: #{transformer_encoder_block.1} parent=1 // pred_region
      %s36 = ssub.s32 2816, 2816
      %37 = vsyncadd [#allocation6], %s36
      %s38 = sshll.u32 [#allocation7], 4
      %s39 = int_to_ptr.vmem [resolvable:$true] %s38
      %44 = dma.hbm_to_vmem [thread:$0]  %s2, 2816, %s39, [#allocation6], 128, 128, 8
    $region13: #{transformer_encoder_block.1} parent=1 // pred_fallthru
      _
    // Predicated region
    $region14: #{transformer_encoder_block.1} parent=1 // pred_check
      _
    $region15: #{transformer_encoder_block.1} parent=1 // pred_check_branch
      %46 = sbr.rel (0) target = $region17
    $region16: #{transformer_encoder_block.1} parent=1 // pred_region
      %47 = dma.done [#allocation3], 256
    $region17: #{transformer_encoder_block.1} parent=1 // pred_fallthru
      _
    // Predicated region
    $region18: #{transformer_encoder_block.1} parent=1 // pred_check
      _
    $region19: #{transformer_encoder_block.1} parent=1 // pred_check_branch
      %49 = sbr.rel (0) target = $region21
    $region20: #{transformer_encoder_block.1} parent=1 // pred_region
      %50 = dma.done [#allocation6], 128
    $region21: #{transformer_encoder_block.1} parent=1 // pred_fallthru
      _
    // Predicated region
    $region22: #{transformer_encoder_block.1} parent=1 // pred_check
      _
    $region23: #{transformer_encoder_block.1} parent=1 // pred_check_branch
      %52 = sbr.rel (0) target = $region25
    $region24: #{transformer_encoder_block.1} parent=1 // pred_region
      %53 = dma.done [#allocation6], 2816
    $region25: #{transformer_encoder_block.1} parent=1 // pred_fallthru
      _
    %v54 = vld [vmem:[#allocation2] sm:$0xff]
    %v55 = vld [vmem:[#allocation2 + $0x8] sm:$0xff]
    %v56 = vld [vmem:[#allocation5] sm:$0xff]
    %vm57 = vcmask 261120
    %v58 = vsel %vm57, %v54, 0.0
    %59 = vadd.xlane.f32.xlu0 %v58
    %v60 = vpop.xlane.xlu0 %59
    %v61 = vsel %vm57, %v55, 0.0
    %62 = vadd.xlane.f32.xlu0 %v61
    %v63 = vpop.xlane.xlu0 %62
    %v64 = vrcp.pop 32.0
    %v65 = vmul.f32 %v60, %v64
    %v66 = vmul.f32 %v63, %v64
    %v67 = vmul.f32 %v54, %v54
    %v68 = vmul.f32 %v55, %v55
    %v69 = vsel %vm57, %v67, 0.0
    %70 = vadd.xlane.f32.xlu0 %v69
    %v71 = vpop.xlane.xlu0 %70
    %v72 = vsel %vm57, %v68, 0.0
    %73 = vadd.xlane.f32.xlu0 %v72
    %v74 = vpop.xlane.xlu0 %73
    %v75 = vmul.f32 %v71, %v64
    %v76 = vmul.f32 %v74, %v64
    %v77 = vmul.f32 %v65, %v65
    %v78 = vmul.f32 %v66, %v66
    %v79 = vsub.f32 %v75, %v77
    %v80 = vsub.f32 %v76, %v78
    %v81 = vsub.f32 %v54, %v65
    %v82 = vsub.f32 %v55, %v66
    %v83 = vadd.f32 %v79, 1e-05
    %v84 = vadd.f32 %v80, 1e-05
    %v85 = vrsqrt.pop %v83
    %v86 = vrsqrt.pop %v84
    %v87 = vmul.f32 %v81, %v85
    %v88 = vmul.f32 %v82, %v86
    %v89 = vlaneseq
    %v90 = vshrl.u32 %v89, 7
    %v91 = vsub.s32 0, %v90
    %v92 = vrot.slane %v56, %v91
    %v93 = vmul.f32 %v87, %v92
    %v94 = vmul.f32 %v88, %v92
    %v95 = vlaneseq
    %v96 = vshrl.u32 %v95, 7
    %v97 = vsub.s32 1, %v96
    %v98 = vrot.slane %v56, %v97
    %v99 = vadd.f32 %v93, %v98
    %v100 = vadd.f32 %v94, %v98
    %v101 = vld [vmem:[#allocation7] sm:$0xff]
    %v102 = vld [vmem:[#allocation7 + $0x8] sm:$0xff]
    %v103 = vld [vmem:[#allocation7 + $0x10] sm:$0xff]
    %v104 = vld [vmem:[#allocation7 + $0x18] sm:$0xff]
    %v105 = vlaneseq
    %v106 = vshrl.u32 %v105, 7
    %v107 = vsub.s32 2, %v106
    %v108 = vrot.slane %v56, %v107
    %v110 = vsel %vm57, %v99, 0
    %v113 = vsel %vm57, %v100, 0
    %115 = vmatprep.subr.mxu0 0.0
    %116 = vmatpush1.msra.mxu0 0.0
    %117 = vmatprep.subr.mxu0 0.0
    %118 = vmatpush1.msra.mxu0 0.0
    %119 = vmatprep.subr.mxu0 0.0
    %120 = vmatpush1.msra.mxu0 0.0
    %121 = vmatprep.subr.mxu0 0.0
    %122 = vmatpush1.msra.mxu0 0.0
    %123 = vmatprep.subr.mxu0 0.0
    %124 = vmatpush1.msra.mxu0 0.0
    %125 = vmatprep.subr.mxu0 0.0
    %126 = vmatpush1.msra.mxu0 0.0
    %127 = vmatprep.subr.mxu0 0.0
    %128 = vmatpush1.msra.mxu0 0.0
    %129 = vmatprep.subr.mxu0 0.0
    %130 = vmatpush1.msra.mxu0 0.0
    %131 = vmatprep.subr.mxu0 0.0
    %132 = vmatpush1.msra.mxu0 0.0
    %133 = vmatprep.subr.mxu0 0.0
    %134 = vmatpush1.msra.mxu0 0.0
    %135 = vmatprep.subr.mxu0 0.0
    %136 = vmatpush1.msra.mxu0 0.0
    %137 = vmatprep.subr.mxu0 0.0
    %138 = vmatpush1.msra.mxu0 0.0
    %139 = vmatprep.subr.mxu0 0.0
    %140 = vmatpush1.msra.mxu0 %v104
    %141 = vmatprep.subr.mxu0 0.0
    %142 = vmatpush1.msra.mxu0 %v103
    %143 = vmatprep.subr.mxu0 0.0
    %144 = vmatpush1.msra.mxu0 %v102
    %145 = vmatprep.subr.mxu0 0.0
    %146 = vmatpush1.msra.mxu0 %v101
    %147 = vmatprep.subr.mxu0 0.0
    %148 = vmatpush2.msra.mxu0 0.0
    %149 = vmatprep.subr.mxu0 0.0
    %150 = vmatpush2.msra.mxu0 0.0
    %151 = vmatprep.subr.mxu0 0.0
    %152 = vmatpush2.msra.mxu0 0.0
    %153 = vmatprep.subr.mxu0 0.0
    %154 = vmatpush2.msra.mxu0 0.0
    %155 = vmatprep.subr.mxu0 0.0
    %156 = vmatpush2.msra.mxu0 0.0
    %157 = vmatprep.subr.mxu0 0.0
    %158 = vmatpush2.msra.mxu0 0.0
    %159 = vmatprep.subr.mxu0 0.0
    %160 = vmatpush2.msra.mxu0 0.0
    %161 = vmatprep.subr.mxu0 0.0
    %162 = vmatpush2.msra.mxu0 0.0
    %163 = vmatprep.subr.mxu0 0.0
    %164 = vmatpush2.msra.mxu0 0.0
    %165 = vmatprep.subr.mxu0 0.0
    %166 = vmatpush2.msra.mxu0 0.0
    %167 = vmatprep.subr.mxu0 0.0
    %168 = vmatpush2.msra.mxu0 0.0
    %169 = vmatprep.subr.mxu0 0.0
    %170 = vmatpush2.msra.mxu0 0.0
    %171 = vmatprep.subr.mxu0 0.0
    %172 = vmatpush2.msra.mxu0 0.0
    %173 = vmatprep.subr.mxu0 0.0
    %174 = vmatpush2.msra.mxu0 0.0
    %175 = vmatprep.subr.mxu0 0.0
    %176 = vmatpush2.msra.mxu0 0.0
    %177 = vmatprep.subr.mxu0 0.0
    %178 = vmatpush2.msra.mxu0 0.0
    %179 = vmatprep.mubr.f32.mxu0 0.0
    %180 = vmatmul.mubr.f32.gmra.mxu0 %v110
    %v181 = vpop.f32.mrf.mxu0
    %v182 = vadd.f32 %v108, %v181
    %v183 = vpop.f32.mrf.mxu0
    %184 = vmatprep.mubr.f32.mxu0 0.0
    %185 = vmatmul.mubr.f32.gmra.mxu0 %v113
    %v186 = vpop.f32.mrf.mxu0
    %v187 = vadd.f32 %v108, %v186
    %v188 = vpop.f32.mrf.mxu0
    %189 = vdwg.mxu0
    %v190 = vld [vmem:[#allocation7 + $0xa0] sm:$0xff]
    %v191 = vld [vmem:[#allocation7 + $0xa8] sm:$0xff]
    %v192 = vld [vmem:[#allocation7 + $0x20] sm:$0xff]
    %v193 = vld [vmem:[#allocation7 + $0x28] sm:$0xff]
    %v194 = vld [vmem:[#allocation7 + $0x30] sm:$0xff]
    %v195 = vld [vmem:[#allocation7 + $0x38] sm:$0xff]
    %198 = vrot.lane.b32.xlu0 %v182, 96
    %v199 = vpop.permute.xlu0 %198
    %200 = vrot.lane.b32.xlu0 %v187, 96
    %v201 = vpop.permute.xlu0 %200
    %vm202 = vcmask 64512
    %v203 = vsel %vm202, %v182, 0
    %v205 = vsel %vm202, %v187, 0
    %v207 = vsel %vm202, %v199, 0
    %v209 = vsel %vm202, %v201, 0
    %211 = vmatprep.subr.mxu0 0.0
    %212 = vmatpush1.xpose.msra.mxu0 0.0
    %213 = vmatprep.subr.mxu0 0.0
    %214 = vmatpush1.xpose.msra.mxu0 0.0
    %215 = vmatprep.subr.mxu0 0.0
    %216 = vmatpush1.xpose.msra.mxu0 0.0
    %217 = vmatprep.subr.mxu0 0.0
    %218 = vmatpush1.xpose.msra.mxu0 0.0
    %219 = vmatprep.subr.mxu0 0.0
    %220 = vmatpush1.xpose.msra.mxu0 0.0
    %221 = vmatprep.subr.mxu0 0.0
    %222 = vmatpush1.xpose.msra.mxu0 0.0
    %223 = vmatprep.subr.mxu0 0.0
    %224 = vmatpush1.xpose.msra.mxu0 0.0
    %225 = vmatprep.subr.mxu0 0.0
    %226 = vmatpush1.xpose.msra.mxu0 0.0
    %227 = vmatprep.subr.mxu0 0.0
    %228 = vmatpush1.xpose.msra.mxu0 0.0
    %229 = vmatprep.subr.mxu0 0.0
    %230 = vmatpush1.xpose.msra.mxu0 0.0
    %231 = vmatprep.subr.mxu0 0.0
    %232 = vmatpush1.xpose.msra.mxu0 0.0
    %233 = vmatprep.subr.mxu0 0.0
    %234 = vmatpush1.xpose.msra.mxu0 0.0
    %235 = vmatprep.subr.mxu0 0.0
    %236 = vmatpush1.xpose.msra.mxu0 0.0
    %237 = vmatprep.subr.mxu0 0.0
    %238 = vmatpush1.xpose.msra.mxu0 0.0
    %239 = vmatprep.subr.mxu0 0.0
    %240 = vmatpush1.xpose.msra.mxu0 %v209
    %241 = vmatprep.subr.mxu0 0.0
    %242 = vmatpush1.xpose.msra.mxu0 %v207
    %243 = vmatprep.subr.mxu0 0.0
    %244 = vmatpush2.xpose.msra.mxu0 0.0
    %245 = vmatprep.subr.mxu0 0.0
    %246 = vmatpush2.xpose.msra.mxu0 0.0
    %247 = vmatprep.subr.mxu0 0.0
    %248 = vmatpush2.xpose.msra.mxu0 0.0
    %249 = vmatprep.subr.mxu0 0.0
    %250 = vmatpush2.xpose.msra.mxu0 0.0
    %251 = vmatprep.subr.mxu0 0.0
    %252 = vmatpush2.xpose.msra.mxu0 0.0
    %253 = vmatprep.subr.mxu0 0.0
    %254 = vmatpush2.xpose.msra.mxu0 0.0
    %255 = vmatprep.subr.mxu0 0.0
    %256 = vmatpush2.xpose.msra.mxu0 0.0
    %257 = vmatprep.subr.mxu0 0.0
    %258 = vmatpush2.xpose.msra.mxu0 0.0
    %259 = vmatprep.subr.mxu0 0.0
    %260 = vmatpush2.xpose.msra.mxu0 0.0
    %261 = vmatprep.subr.mxu0 0.0
    %262 = vmatpush2.xpose.msra.mxu0 0.0
    %263 = vmatprep.subr.mxu0 0.0
    %264 = vmatpush2.xpose.msra.mxu0 0.0
    %265 = vmatprep.subr.mxu0 0.0
    %266 = vmatpush2.xpose.msra.mxu0 0.0
    %267 = vmatprep.subr.mxu0 0.0
    %268 = vmatpush2.xpose.msra.mxu0 0.0
    %269 = vmatprep.subr.mxu0 0.0
    %270 = vmatpush2.xpose.msra.mxu0 0.0
    %271 = vmatprep.subr.mxu0 0.0
    %272 = vmatpush2.xpose.msra.mxu0 0.0
    %273 = vmatprep.subr.mxu0 0.0
    %274 = vmatpush2.xpose.msra.mxu0 0.0
    %275 = vmatprep.mubr.f32.mxu0 0.0
    %276 = vmatmul.mubr.f32.gmra.mxu0 %v203
    %v277 = vpop.f32.mrf.mxu0
    %v278 = vadd.f32 %v190, %v277
    %v279 = vpop.f32.mrf.mxu0
    %280 = vmatprep.mubr.f32.mxu0 0.0
    %281 = vmatmul.mubr.f32.gmra.mxu0 %v205
    %v282 = vpop.f32.mrf.mxu0
    %v283 = vadd.f32 %v191, %v282
    %v284 = vpop.f32.mrf.mxu0
    %285 = vdwg.mxu0
    %vm286 = vcmask 130048
    %v287 = vsel %vm286, %v278, -inf
    %288 = vmax.xlane.f32.xlu0 %v287
    %v289 = vpop.xlane.xlu0 %288
    %v290 = vsel %vm286, %v283, -inf
    %291 = vmax.xlane.f32.xlu0 %v290
    %v292 = vpop.xlane.xlu0 %291
    %v293 = vsub.f32 %v278, %v289
    %v294 = vsub.f32 %v283, %v292
    %v295 = vmul.f32 %v293, 1.442695
    %v296 = vpow.pop %v295
    %v297 = vmul.f32 %v294, 1.442695
    %v298 = vpow.pop %v297
    %v299 = vsel %vm286, %v296, 0.0
    %300 = vadd.xlane.f32.xlu0 %v299
    %v301 = vpop.xlane.xlu0 %300
    %v302 = vsel %vm286, %v298, 0.0
    %303 = vadd.xlane.f32.xlu0 %v302
    %v304 = vpop.xlane.xlu0 %303
    %v305 = vrcp.pop %v301
    %v306 = vrcp.pop %v304
    %v307 = vmul.f32 %v301, %v305
    %v308 = vmul.f32 %v304, %v306
    %v309 = vsub.f32 2.0, %v307
    %v310 = vsub.f32 2.0, %v308
    %v311 = vmul.f32 %v305, %v309
    %v312 = vmul.f32 %v306, %v310
    %v313 = vmul.f32 %v296, %v311
    %v314 = vmul.f32 %v298, %v312
    %315 = vrot.lane.b32.xlu0 %v182, 64
    %v316 = vpop.permute.xlu0 %315
    %317 = vrot.lane.b32.xlu0 %v187, 64
    %v318 = vpop.permute.xlu0 %317
    %v322 = vsel %vm286, %v313, 0
    %v325 = vsel %vm286, %v314, 0
    %327 = vmatprep.subr.mxu0 0.0
    %328 = vmatpush1.msra.mxu0 0.0
    %329 = vmatprep.subr.mxu0 0.0
    %330 = vmatpush1.msra.mxu0 0.0
    %331 = vmatprep.subr.mxu0 0.0
    %332 = vmatpush1.msra.mxu0 0.0
    %333 = vmatprep.subr.mxu0 0.0
    %334 = vmatpush1.msra.mxu0 0.0
    %335 = vmatprep.subr.mxu0 0.0
    %336 = vmatpush1.msra.mxu0 0.0
    %337 = vmatprep.subr.mxu0 0.0
    %338 = vmatpush1.msra.mxu0 0.0
    %339 = vmatprep.subr.mxu0 0.0
    %340 = vmatpush1.msra.mxu0 0.0
    %341 = vmatprep.subr.mxu0 0.0
    %342 = vmatpush1.msra.mxu0 0.0
    %343 = vmatprep.subr.mxu0 0.0
    %344 = vmatpush1.msra.mxu0 0.0
    %345 = vmatprep.subr.mxu0 0.0
    %346 = vmatpush1.msra.mxu0 0.0
    %347 = vmatprep.subr.mxu0 0.0
    %348 = vmatpush1.msra.mxu0 0.0
    %349 = vmatprep.subr.mxu0 0.0
    %350 = vmatpush1.msra.mxu0 0.0
    %351 = vmatprep.subr.mxu0 0.0
    %352 = vmatpush1.msra.mxu0 0.0
    %353 = vmatprep.subr.mxu0 0.0
    %354 = vmatpush1.msra.mxu0 0.0
    %355 = vmatprep.subr.mxu0 0.0
    %356 = vmatpush1.msra.mxu0 %v318
    %357 = vmatprep.subr.mxu0 0.0
    %358 = vmatpush1.msra.mxu0 %v316
    %359 = vmatprep.subr.mxu0 0.0
    %360 = vmatpush2.msra.mxu0 0.0
    %361 = vmatprep.subr.mxu0 0.0
    %362 = vmatpush2.msra.mxu0 0.0
    %363 = vmatprep.subr.mxu0 0.0
    %364 = vmatpush2.msra.mxu0 0.0
    %365 = vmatprep.subr.mxu0 0.0
    %366 = vmatpush2.msra.mxu0 0.0
    %367 = vmatprep.subr.mxu0 0.0
    %368 = vmatpush2.msra.mxu0 0.0
    %369 = vmatprep.subr.mxu0 0.0
    %370 = vmatpush2.msra.mxu0 0.0
    %371 = vmatprep.subr.mxu0 0.0
    %372 = vmatpush2.msra.mxu0 0.0
    %373 = vmatprep.subr.mxu0 0.0
    %374 = vmatpush2.msra.mxu0 0.0
    %375 = vmatprep.subr.mxu0 0.0
    %376 = vmatpush2.msra.mxu0 0.0
    %377 = vmatprep.subr.mxu0 0.0
    %378 = vmatpush2.msra.mxu0 0.0
    %379 = vmatprep.subr.mxu0 0.0
    %380 = vmatpush2.msra.mxu0 0.0
    %381 = vmatprep.subr.mxu0 0.0
    %382 = vmatpush2.msra.mxu0 0.0
    %383 = vmatprep.subr.mxu0 0.0
    %384 = vmatpush2.msra.mxu0 0.0
    %385 = vmatprep.subr.mxu0 0.0
    %386 = vmatpush2.msra.mxu0 0.0
    %387 = vmatprep.subr.mxu0 0.0
    %388 = vmatpush2.msra.mxu0 0.0
    %389 = vmatprep.subr.mxu0 0.0
    %390 = vmatpush2.msra.mxu0 0.0
    %391 = vmatprep.mubr.f32.mxu0 0.0
    %392 = vmatmul.mubr.f32.gmra.mxu0 %v322
    %v393 = vpop.f32.mrf.mxu0
    %v394 = vadd.f32 0.0, %v393
    %v395 = vpop.f32.mrf.mxu0
    %396 = vmatprep.mubr.f32.mxu0 0.0
    %397 = vmatmul.mubr.f32.gmra.mxu0 %v325
    %v398 = vpop.f32.mrf.mxu0
    %v399 = vadd.f32 0.0, %v398
    %v400 = vpop.f32.mrf.mxu0
    %401 = vdwg.mxu0
    %402 = vrot.lane.b32.xlu0 %v182, 120
    %v403 = vpop.permute.xlu0 %402
    %404 = vrot.lane.b32.xlu0 %v187, 120
    %v405 = vpop.permute.xlu0 %404
    %406 = vrot.lane.b32.xlu0 %v182, 88
    %v407 = vpop.permute.xlu0 %406
    %408 = vrot.lane.b32.xlu0 %v187, 88
    %v409 = vpop.permute.xlu0 %408
    %v410 = vsel %vm202, %v403, 0
    %v412 = vsel %vm202, %v405, 0
    %v414 = vsel %vm202, %v407, 0
    %v416 = vsel %vm202, %v409, 0
    %418 = vmatprep.subr.mxu0 0.0
    %419 = vmatpush1.xpose.msra.mxu0 0.0
    %420 = vmatprep.subr.mxu0 0.0
    %421 = vmatpush1.xpose.msra.mxu0 0.0
    %422 = vmatprep.subr.mxu0 0.0
    %423 = vmatpush1.xpose.msra.mxu0 0.0
    %424 = vmatprep.subr.mxu0 0.0
    %425 = vmatpush1.xpose.msra.mxu0 0.0
    %426 = vmatprep.subr.mxu0 0.0
    %427 = vmatpush1.xpose.msra.mxu0 0.0
    %428 = vmatprep.subr.mxu0 0.0
    %429 = vmatpush1.xpose.msra.mxu0 0.0
    %430 = vmatprep.subr.mxu0 0.0
    %431 = vmatpush1.xpose.msra.mxu0 0.0
    %432 = vmatprep.subr.mxu0 0.0
    %433 = vmatpush1.xpose.msra.mxu0 0.0
    %434 = vmatprep.subr.mxu0 0.0
    %435 = vmatpush1.xpose.msra.mxu0 0.0
    %436 = vmatprep.subr.mxu0 0.0
    %437 = vmatpush1.xpose.msra.mxu0 0.0
    %438 = vmatprep.subr.mxu0 0.0
    %439 = vmatpush1.xpose.msra.mxu0 0.0
    %440 = vmatprep.subr.mxu0 0.0
    %441 = vmatpush1.xpose.msra.mxu0 0.0
    %442 = vmatprep.subr.mxu0 0.0
    %443 = vmatpush1.xpose.msra.mxu0 0.0
    %444 = vmatprep.subr.mxu0 0.0
    %445 = vmatpush1.xpose.msra.mxu0 0.0
    %446 = vmatprep.subr.mxu0 0.0
    %447 = vmatpush1.xpose.msra.mxu0 %v416
    %448 = vmatprep.subr.mxu0 0.0
    %449 = vmatpush1.xpose.msra.mxu0 %v414
    %450 = vmatprep.subr.mxu0 0.0
    %451 = vmatpush2.xpose.msra.mxu0 0.0
    %452 = vmatprep.subr.mxu0 0.0
    %453 = vmatpush2.xpose.msra.mxu0 0.0
    %454 = vmatprep.subr.mxu0 0.0
    %455 = vmatpush2.xpose.msra.mxu0 0.0
    %456 = vmatprep.subr.mxu0 0.0
    %457 = vmatpush2.xpose.msra.mxu0 0.0
    %458 = vmatprep.subr.mxu0 0.0
    %459 = vmatpush2.xpose.msra.mxu0 0.0
    %460 = vmatprep.subr.mxu0 0.0
    %461 = vmatpush2.xpose.msra.mxu0 0.0
    %462 = vmatprep.subr.mxu0 0.0
    %463 = vmatpush2.xpose.msra.mxu0 0.0
    %464 = vmatprep.subr.mxu0 0.0
    %465 = vmatpush2.xpose.msra.mxu0 0.0
    %466 = vmatprep.subr.mxu0 0.0
    %467 = vmatpush2.xpose.msra.mxu0 0.0
    %468 = vmatprep.subr.mxu0 0.0
    %469 = vmatpush2.xpose.msra.mxu0 0.0
    %470 = vmatprep.subr.mxu0 0.0
    %471 = vmatpush2.xpose.msra.mxu0 0.0
    %472 = vmatprep.subr.mxu0 0.0
    %473 = vmatpush2.xpose.msra.mxu0 0.0
    %474 = vmatprep.subr.mxu0 0.0
    %475 = vmatpush2.xpose.msra.mxu0 0.0
    %476 = vmatprep.subr.mxu0 0.0
    %477 = vmatpush2.xpose.msra.mxu0 0.0
    %478 = vmatprep.subr.mxu0 0.0
    %479 = vmatpush2.xpose.msra.mxu0 0.0
    %480 = vmatprep.subr.mxu0 0.0
    %481 = vmatpush2.xpose.msra.mxu0 0.0
    %482 = vmatprep.mubr.f32.mxu0 0.0
    %483 = vmatmul.mubr.f32.gmra.mxu0 %v410
    %v484 = vpop.f32.mrf.mxu0
    %v485 = vadd.f32 %v190, %v484
    %v486 = vpop.f32.mrf.mxu0
    %487 = vmatprep.mubr.f32.mxu0 0.0
    %488 = vmatmul.mubr.f32.gmra.mxu0 %v412
    %v489 = vpop.f32.mrf.mxu0
    %v490 = vadd.f32 %v191, %v489
    %v491 = vpop.f32.mrf.mxu0
    %492 = vdwg.mxu0
    %v493 = vsel %vm286, %v485, -inf
    %494 = vmax.xlane.f32.xlu0 %v493
    %v495 = vpop.xlane.xlu0 %494
    %v496 = vsel %vm286, %v490, -inf
    %497 = vmax.xlane.f32.xlu0 %v496
    %v498 = vpop.xlane.xlu0 %497
    %v499 = vsub.f32 %v485, %v495
    %v500 = vsub.f32 %v490, %v498
    %v501 = vmul.f32 %v499, 1.442695
    %v502 = vpow.pop %v501
    %v503 = vmul.f32 %v500, 1.442695
    %v504 = vpow.pop %v503
    %v505 = vsel %vm286, %v502, 0.0
    %506 = vadd.xlane.f32.xlu0 %v505
    %v507 = vpop.xlane.xlu0 %506
    %v508 = vsel %vm286, %v504, 0.0
    %509 = vadd.xlane.f32.xlu0 %v508
    %v510 = vpop.xlane.xlu0 %509
    %v511 = vrcp.pop %v507
    %v512 = vrcp.pop %v510
    %v513 = vmul.f32 %v507, %v511
    %v514 = vmul.f32 %v510, %v512
    %v515 = vsub.f32 2.0, %v513
    %v516 = vsub.f32 2.0, %v514
    %v517 = vmul.f32 %v511, %v515
    %v518 = vmul.f32 %v512, %v516
    %v519 = vmul.f32 %v502, %v517
    %v520 = vmul.f32 %v504, %v518
    %521 = vrot.lane.b32.xlu0 %v182, 56
    %v522 = vpop.permute.xlu0 %521
    %523 = vrot.lane.b32.xlu0 %v187, 56
    %v524 = vpop.permute.xlu0 %523
    %v528 = vsel %vm286, %v519, 0
    %v531 = vsel %vm286, %v520, 0
    %533 = vmatprep.subr.mxu0 0.0
    %534 = vmatpush1.msra.mxu0 0.0
    %535 = vmatprep.subr.mxu0 0.0
    %536 = vmatpush1.msra.mxu0 0.0
    %537 = vmatprep.subr.mxu0 0.0
    %538 = vmatpush1.msra.mxu0 0.0
    %539 = vmatprep.subr.mxu0 0.0
    %540 = vmatpush1.msra.mxu0 0.0
    %541 = vmatprep.subr.mxu0 0.0
    %542 = vmatpush1.msra.mxu0 0.0
    %543 = vmatprep.subr.mxu0 0.0
    %544 = vmatpush1.msra.mxu0 0.0
    %545 = vmatprep.subr.mxu0 0.0
    %546 = vmatpush1.msra.mxu0 0.0
    %547 = vmatprep.subr.mxu0 0.0
    %548 = vmatpush1.msra.mxu0 0.0
    %549 = vmatprep.subr.mxu0 0.0
    %550 = vmatpush1.msra.mxu0 0.0
    %551 = vmatprep.subr.mxu0 0.0
    %552 = vmatpush1.msra.mxu0 0.0
    %553 = vmatprep.subr.mxu0 0.0
    %554 = vmatpush1.msra.mxu0 0.0
    %555 = vmatprep.subr.mxu0 0.0
    %556 = vmatpush1.msra.mxu0 0.0
    %557 = vmatprep.subr.mxu0 0.0
    %558 = vmatpush1.msra.mxu0 0.0
    %559 = vmatprep.subr.mxu0 0.0
    %560 = vmatpush1.msra.mxu0 0.0
    %561 = vmatprep.subr.mxu0 0.0
    %562 = vmatpush1.msra.mxu0 %v524
    %563 = vmatprep.subr.mxu0 0.0
    %564 = vmatpush1.msra.mxu0 %v522
    %565 = vmatprep.subr.mxu0 0.0
    %566 = vmatpush2.msra.mxu0 0.0
    %567 = vmatprep.subr.mxu0 0.0
    %568 = vmatpush2.msra.mxu0 0.0
    %569 = vmatprep.subr.mxu0 0.0
    %570 = vmatpush2.msra.mxu0 0.0
    %571 = vmatprep.subr.mxu0 0.0
    %572 = vmatpush2.msra.mxu0 0.0
    %573 = vmatprep.subr.mxu0 0.0
    %574 = vmatpush2.msra.mxu0 0.0
    %575 = vmatprep.subr.mxu0 0.0
    %576 = vmatpush2.msra.mxu0 0.0
    %577 = vmatprep.subr.mxu0 0.0
    %578 = vmatpush2.msra.mxu0 0.0
    %579 = vmatprep.subr.mxu0 0.0
    %580 = vmatpush2.msra.mxu0 0.0
    %581 = vmatprep.subr.mxu0 0.0
    %582 = vmatpush2.msra.mxu0 0.0
    %583 = vmatprep.subr.mxu0 0.0
    %584 = vmatpush2.msra.mxu0 0.0
    %585 = vmatprep.subr.mxu0 0.0
    %586 = vmatpush2.msra.mxu0 0.0
    %587 = vmatprep.subr.mxu0 0.0
    %588 = vmatpush2.msra.mxu0 0.0
    %589 = vmatprep.subr.mxu0 0.0
    %590 = vmatpush2.msra.mxu0 0.0
    %591 = vmatprep.subr.mxu0 0.0
    %592 = vmatpush2.msra.mxu0 0.0
    %593 = vmatprep.subr.mxu0 0.0
    %594 = vmatpush2.msra.mxu0 0.0
    %595 = vmatprep.subr.mxu0 0.0
    %596 = vmatpush2.msra.mxu0 0.0
    %597 = vmatprep.mubr.f32.mxu0 0.0
    %598 = vmatmul.mubr.f32.gmra.mxu0 %v528
    %v599 = vpop.f32.mrf.mxu0
    %v600 = vadd.f32 0.0, %v599
    %v601 = vpop.f32.mrf.mxu0
    %602 = vmatprep.mubr.f32.mxu0 0.0
    %603 = vmatmul.mubr.f32.gmra.mxu0 %v531
    %v604 = vpop.f32.mrf.mxu0
    %v605 = vadd.f32 0.0, %v604
    %v606 = vpop.f32.mrf.mxu0
    %607 = vdwg.mxu0
    %v609 = vsel %vm202, %v600, 0
    %v612 = vsel %vm202, %v605, 0
    %614 = vmatprep.subr.mxu0 0.0
    %615 = vmatpush1.msra.mxu0 0.0
    %616 = vmatprep.subr.mxu0 0.0
    %617 = vmatpush1.msra.mxu0 0.0
    %618 = vmatprep.subr.mxu0 0.0
    %619 = vmatpush1.msra.mxu0 0.0
    %620 = vmatprep.subr.mxu0 0.0
    %621 = vmatpush1.msra.mxu0 0.0
    %622 = vmatprep.subr.mxu0 0.0
    %623 = vmatpush1.msra.mxu0 0.0
    %624 = vmatprep.subr.mxu0 0.0
    %625 = vmatpush1.msra.mxu0 0.0
    %626 = vmatprep.subr.mxu0 0.0
    %627 = vmatpush1.msra.mxu0 0.0
    %628 = vmatprep.subr.mxu0 0.0
    %629 = vmatpush1.msra.mxu0 0.0
    %630 = vmatprep.subr.mxu0 0.0
    %631 = vmatpush1.msra.mxu0 0.0
    %632 = vmatprep.subr.mxu0 0.0
    %633 = vmatpush1.msra.mxu0 0.0
    %634 = vmatprep.subr.mxu0 0.0
    %635 = vmatpush1.msra.mxu0 0.0
    %636 = vmatprep.subr.mxu0 0.0
    %637 = vmatpush1.msra.mxu0 0.0
    %638 = vmatprep.subr.mxu0 0.0
    %639 = vmatpush1.msra.mxu0 0.0
    %640 = vmatprep.subr.mxu0 0.0
    %641 = vmatpush1.msra.mxu0 0.0
    %642 = vmatprep.subr.mxu0 0.0
    %643 = vmatpush1.msra.mxu0 0.0
    %644 = vmatprep.subr.mxu0 0.0
    %645 = vmatpush1.msra.mxu0 %v193
    %646 = vmatprep.subr.mxu0 0.0
    %647 = vmatpush2.msra.mxu0 0.0
    %648 = vmatprep.subr.mxu0 0.0
    %649 = vmatpush2.msra.mxu0 0.0
    %650 = vmatprep.subr.mxu0 0.0
    %651 = vmatpush2.msra.mxu0 0.0
    %652 = vmatprep.subr.mxu0 0.0
    %653 = vmatpush2.msra.mxu0 0.0
    %654 = vmatprep.subr.mxu0 0.0
    %655 = vmatpush2.msra.mxu0 0.0
    %656 = vmatprep.subr.mxu0 0.0
    %657 = vmatpush2.msra.mxu0 0.0
    %658 = vmatprep.subr.mxu0 0.0
    %659 = vmatpush2.msra.mxu0 0.0
    %660 = vmatprep.subr.mxu0 0.0
    %661 = vmatpush2.msra.mxu0 0.0
    %662 = vmatprep.subr.mxu0 0.0
    %663 = vmatpush2.msra.mxu0 0.0
    %664 = vmatprep.subr.mxu0 0.0
    %665 = vmatpush2.msra.mxu0 0.0
    %666 = vmatprep.subr.mxu0 0.0
    %667 = vmatpush2.msra.mxu0 0.0
    %668 = vmatprep.subr.mxu0 0.0
    %669 = vmatpush2.msra.mxu0 0.0
    %670 = vmatprep.subr.mxu0 0.0
    %671 = vmatpush2.msra.mxu0 0.0
    %672 = vmatprep.subr.mxu0 0.0
    %673 = vmatpush2.msra.mxu0 0.0
    %674 = vmatprep.subr.mxu0 0.0
    %675 = vmatpush2.msra.mxu0 0.0
    %676 = vmatprep.subr.mxu0 0.0
    %677 = vmatpush2.msra.mxu0 0.0
    %678 = vmatprep.mubr.f32.mxu0 0.0
    %679 = vmatmul.mubr.f32.gmra.mxu0 %v609
    %v680 = vpop.f32.mrf.mxu0
    %v681 = vadd.f32 0.0, %v680
    %v682 = vpop.f32.mrf.mxu0
    %683 = vmatprep.mubr.f32.mxu0 0.0
    %684 = vmatmul.mubr.f32.gmra.mxu0 %v612
    %v685 = vpop.f32.mrf.mxu0
    %v686 = vadd.f32 0.0, %v685
    %v687 = vpop.f32.mrf.mxu0
    %688 = vdwg.mxu0
    %v690 = vsel %vm202, %v394, 0
    %v693 = vsel %vm202, %v399, 0
    %695 = vmatprep.subr.mxu0 0.0
    %696 = vmatpush1.msra.mxu0 0.0
    %697 = vmatprep.subr.mxu0 0.0
    %698 = vmatpush1.msra.mxu0 0.0
    %699 = vmatprep.subr.mxu0 0.0
    %700 = vmatpush1.msra.mxu0 0.0
    %701 = vmatprep.subr.mxu0 0.0
    %702 = vmatpush1.msra.mxu0 0.0
    %703 = vmatprep.subr.mxu0 0.0
    %704 = vmatpush1.msra.mxu0 0.0
    %705 = vmatprep.subr.mxu0 0.0
    %706 = vmatpush1.msra.mxu0 0.0
    %707 = vmatprep.subr.mxu0 0.0
    %708 = vmatpush1.msra.mxu0 0.0
    %709 = vmatprep.subr.mxu0 0.0
    %710 = vmatpush1.msra.mxu0 0.0
    %711 = vmatprep.subr.mxu0 0.0
    %712 = vmatpush1.msra.mxu0 0.0
    %713 = vmatprep.subr.mxu0 0.0
    %714 = vmatpush1.msra.mxu0 0.0
    %715 = vmatprep.subr.mxu0 0.0
    %716 = vmatpush1.msra.mxu0 0.0
    %717 = vmatprep.subr.mxu0 0.0
    %718 = vmatpush1.msra.mxu0 0.0
    %719 = vmatprep.subr.mxu0 0.0
    %720 = vmatpush1.msra.mxu0 0.0
    %721 = vmatprep.subr.mxu0 0.0
    %722 = vmatpush1.msra.mxu0 0.0
    %723 = vmatprep.subr.mxu0 0.0
    %724 = vmatpush1.msra.mxu0 0.0
    %725 = vmatprep.subr.mxu0 0.0
    %726 = vmatpush1.msra.mxu0 %v192
    %727 = vmatprep.subr.mxu0 0.0
    %728 = vmatpush2.msra.mxu0 0.0
    %729 = vmatprep.subr.mxu0 0.0
    %730 = vmatpush2.msra.mxu0 0.0
    %731 = vmatprep.subr.mxu0 0.0
    %732 = vmatpush2.msra.mxu0 0.0
    %733 = vmatprep.subr.mxu0 0.0
    %734 = vmatpush2.msra.mxu0 0.0
    %735 = vmatprep.subr.mxu0 0.0
    %736 = vmatpush2.msra.mxu0 0.0
    %737 = vmatprep.subr.mxu0 0.0
    %738 = vmatpush2.msra.mxu0 0.0
    %739 = vmatprep.subr.mxu0 0.0
    %740 = vmatpush2.msra.mxu0 0.0
    %741 = vmatprep.subr.mxu0 0.0
    %742 = vmatpush2.msra.mxu0 0.0
    %743 = vmatprep.subr.mxu0 0.0
    %744 = vmatpush2.msra.mxu0 0.0
    %745 = vmatprep.subr.mxu0 0.0
    %746 = vmatpush2.msra.mxu0 0.0
    %747 = vmatprep.subr.mxu0 0.0
    %748 = vmatpush2.msra.mxu0 0.0
    %749 = vmatprep.subr.mxu0 0.0
    %750 = vmatpush2.msra.mxu0 0.0
    %751 = vmatprep.subr.mxu0 0.0
    %752 = vmatpush2.msra.mxu0 0.0
    %753 = vmatprep.subr.mxu0 0.0
    %754 = vmatpush2.msra.mxu0 0.0
    %755 = vmatprep.subr.mxu0 0.0
    %756 = vmatpush2.msra.mxu0 0.0
    %757 = vmatprep.subr.mxu0 0.0
    %758 = vmatpush2.msra.mxu0 0.0
    %759 = vmatprep.mubr.f32.mxu0 0.0
    %760 = vmatmul.mubr.f32.gmra.mxu0 %v690
    %v761 = vpop.f32.mrf.mxu0
    %v762 = vadd.f32 %v681, %v761
    %v763 = vpop.f32.mrf.mxu0
    %764 = vmatprep.mubr.f32.mxu0 0.0
    %765 = vmatmul.mubr.f32.gmra.mxu0 %v693
    %v766 = vpop.f32.mrf.mxu0
    %v767 = vadd.f32 %v686, %v766
    %v768 = vpop.f32.mrf.mxu0
    %769 = vdwg.mxu0
    %770 = vrot.lane.b32.xlu0 %v182, 112
    %v771 = vpop.permute.xlu0 %770
    %772 = vrot.lane.b32.xlu0 %v187, 112
    %v773 = vpop.permute.xlu0 %772
    %774 = vrot.lane.b32.xlu0 %v182, 80
    %v775 = vpop.permute.xlu0 %774
    %776 = vrot.lane.b32.xlu0 %v187, 80
    %v777 = vpop.permute.xlu0 %776
    %v778 = vsel %vm202, %v771, 0
    %v780 = vsel %vm202, %v773, 0
    %v782 = vsel %vm202, %v775, 0
    %v784 = vsel %vm202, %v777, 0
    %786 = vmatprep.subr.mxu0 0.0
    %787 = vmatpush1.xpose.msra.mxu0 0.0
    %788 = vmatprep.subr.mxu0 0.0
    %789 = vmatpush1.xpose.msra.mxu0 0.0
    %790 = vmatprep.subr.mxu0 0.0
    %791 = vmatpush1.xpose.msra.mxu0 0.0
    %792 = vmatprep.subr.mxu0 0.0
    %793 = vmatpush1.xpose.msra.mxu0 0.0
    %794 = vmatprep.subr.mxu0 0.0
    %795 = vmatpush1.xpose.msra.mxu0 0.0
    %796 = vmatprep.subr.mxu0 0.0
    %797 = vmatpush1.xpose.msra.mxu0 0.0
    %798 = vmatprep.subr.mxu0 0.0
    %799 = vmatpush1.xpose.msra.mxu0 0.0
    %800 = vmatprep.subr.mxu0 0.0
    %801 = vmatpush1.xpose.msra.mxu0 0.0
    %802 = vmatprep.subr.mxu0 0.0
    %803 = vmatpush1.xpose.msra.mxu0 0.0
    %804 = vmatprep.subr.mxu0 0.0
    %805 = vmatpush1.xpose.msra.mxu0 0.0
    %806 = vmatprep.subr.mxu0 0.0
    %807 = vmatpush1.xpose.msra.mxu0 0.0
    %808 = vmatprep.subr.mxu0 0.0
    %809 = vmatpush1.xpose.msra.mxu0 0.0
    %810 = vmatprep.subr.mxu0 0.0
    %811 = vmatpush1.xpose.msra.mxu0 0.0
    %812 = vmatprep.subr.mxu0 0.0
    %813 = vmatpush1.xpose.msra.mxu0 0.0
    %814 = vmatprep.subr.mxu0 0.0
    %815 = vmatpush1.xpose.msra.mxu0 %v784
    %816 = vmatprep.subr.mxu0 0.0
    %817 = vmatpush1.xpose.msra.mxu0 %v782
    %818 = vmatprep.subr.mxu0 0.0
    %819 = vmatpush2.xpose.msra.mxu0 0.0
    %820 = vmatprep.subr.mxu0 0.0
    %821 = vmatpush2.xpose.msra.mxu0 0.0
    %822 = vmatprep.subr.mxu0 0.0
    %823 = vmatpush2.xpose.msra.mxu0 0.0
    %824 = vmatprep.subr.mxu0 0.0
    %825 = vmatpush2.xpose.msra.mxu0 0.0
    %826 = vmatprep.subr.mxu0 0.0
    %827 = vmatpush2.xpose.msra.mxu0 0.0
    %828 = vmatprep.subr.mxu0 0.0
    %829 = vmatpush2.xpose.msra.mxu0 0.0
    %830 = vmatprep.subr.mxu0 0.0
    %831 = vmatpush2.xpose.msra.mxu0 0.0
    %832 = vmatprep.subr.mxu0 0.0
    %833 = vmatpush2.xpose.msra.mxu0 0.0
    %834 = vmatprep.subr.mxu0 0.0
    %835 = vmatpush2.xpose.msra.mxu0 0.0
    %836 = vmatprep.subr.mxu0 0.0
    %837 = vmatpush2.xpose.msra.mxu0 0.0
    %838 = vmatprep.subr.mxu0 0.0
    %839 = vmatpush2.xpose.msra.mxu0 0.0
    %840 = vmatprep.subr.mxu0 0.0
    %841 = vmatpush2.xpose.msra.mxu0 0.0
    %842 = vmatprep.subr.mxu0 0.0
    %843 = vmatpush2.xpose.msra.mxu0 0.0
    %844 = vmatprep.subr.mxu0 0.0
    %845 = vmatpush2.xpose.msra.mxu0 0.0
    %846 = vmatprep.subr.mxu0 0.0
    %847 = vmatpush2.xpose.msra.mxu0 0.0
    %848 = vmatprep.subr.mxu0 0.0
    %849 = vmatpush2.xpose.msra.mxu0 0.0
    %850 = vmatprep.mubr.f32.mxu0 0.0
    %851 = vmatmul.mubr.f32.gmra.mxu0 %v778
    %v852 = vpop.f32.mrf.mxu0
    %v853 = vadd.f32 %v190, %v852
    %v854 = vpop.f32.mrf.mxu0
    %855 = vmatprep.mubr.f32.mxu0 0.0
    %856 = vmatmul.mubr.f32.gmra.mxu0 %v780
    %v857 = vpop.f32.mrf.mxu0
    %v858 = vadd.f32 %v191, %v857
    %v859 = vpop.f32.mrf.mxu0
    %860 = vdwg.mxu0
    %v861 = vsel %vm286, %v853, -inf
    %862 = vmax.xlane.f32.xlu0 %v861
    %v863 = vpop.xlane.xlu0 %862
    %v864 = vsel %vm286, %v858, -inf
    %865 = vmax.xlane.f32.xlu0 %v864
    %v866 = vpop.xlane.xlu0 %865
    %v867 = vsub.f32 %v853, %v863
    %v868 = vsub.f32 %v858, %v866
    %v869 = vmul.f32 %v867, 1.442695
    %v870 = vpow.pop %v869
    %v871 = vmul.f32 %v868, 1.442695
    %v872 = vpow.pop %v871
    %v873 = vsel %vm286, %v870, 0.0
    %874 = vadd.xlane.f32.xlu0 %v873
    %v875 = vpop.xlane.xlu0 %874
    %v876 = vsel %vm286, %v872, 0.0
    %877 = vadd.xlane.f32.xlu0 %v876
    %v878 = vpop.xlane.xlu0 %877
    %v879 = vrcp.pop %v875
    %v880 = vrcp.pop %v878
    %v881 = vmul.f32 %v875, %v879
    %v882 = vmul.f32 %v878, %v880
    %v883 = vsub.f32 2.0, %v881
    %v884 = vsub.f32 2.0, %v882
    %v885 = vmul.f32 %v879, %v883
    %v886 = vmul.f32 %v880, %v884
    %v887 = vmul.f32 %v870, %v885
    %v888 = vmul.f32 %v872, %v886
    %889 = vrot.lane.b32.xlu0 %v182, 48
    %v890 = vpop.permute.xlu0 %889
    %891 = vrot.lane.b32.xlu0 %v187, 48
    %v892 = vpop.permute.xlu0 %891
    %v896 = vsel %vm286, %v887, 0
    %v899 = vsel %vm286, %v888, 0
    %901 = vmatprep.subr.mxu0 0.0
    %902 = vmatpush1.msra.mxu0 0.0
    %903 = vmatprep.subr.mxu0 0.0
    %904 = vmatpush1.msra.mxu0 0.0
    %905 = vmatprep.subr.mxu0 0.0
    %906 = vmatpush1.msra.mxu0 0.0
    %907 = vmatprep.subr.mxu0 0.0
    %908 = vmatpush1.msra.mxu0 0.0
    %909 = vmatprep.subr.mxu0 0.0
    %910 = vmatpush1.msra.mxu0 0.0
    %911 = vmatprep.subr.mxu0 0.0
    %912 = vmatpush1.msra.mxu0 0.0
    %913 = vmatprep.subr.mxu0 0.0
    %914 = vmatpush1.msra.mxu0 0.0
    %915 = vmatprep.subr.mxu0 0.0
    %916 = vmatpush1.msra.mxu0 0.0
    %917 = vmatprep.subr.mxu0 0.0
    %918 = vmatpush1.msra.mxu0 0.0
    %919 = vmatprep.subr.mxu0 0.0
    %920 = vmatpush1.msra.mxu0 0.0
    %921 = vmatprep.subr.mxu0 0.0
    %922 = vmatpush1.msra.mxu0 0.0
    %923 = vmatprep.subr.mxu0 0.0
    %924 = vmatpush1.msra.mxu0 0.0
    %925 = vmatprep.subr.mxu0 0.0
    %926 = vmatpush1.msra.mxu0 0.0
    %927 = vmatprep.subr.mxu0 0.0
    %928 = vmatpush1.msra.mxu0 0.0
    %929 = vmatprep.subr.mxu0 0.0
    %930 = vmatpush1.msra.mxu0 %v892
    %931 = vmatprep.subr.mxu0 0.0
    %932 = vmatpush1.msra.mxu0 %v890
    %933 = vmatprep.subr.mxu0 0.0
    %934 = vmatpush2.msra.mxu0 0.0
    %935 = vmatprep.subr.mxu0 0.0
    %936 = vmatpush2.msra.mxu0 0.0
    %937 = vmatprep.subr.mxu0 0.0
    %938 = vmatpush2.msra.mxu0 0.0
    %939 = vmatprep.subr.mxu0 0.0
    %940 = vmatpush2.msra.mxu0 0.0
    %941 = vmatprep.subr.mxu0 0.0
    %942 = vmatpush2.msra.mxu0 0.0
    %943 = vmatprep.subr.mxu0 0.0
    %944 = vmatpush2.msra.mxu0 0.0
    %945 = vmatprep.subr.mxu0 0.0
    %946 = vmatpush2.msra.mxu0 0.0
    %947 = vmatprep.subr.mxu0 0.0
    %948 = vmatpush2.msra.mxu0 0.0
    %949 = vmatprep.subr.mxu0 0.0
    %950 = vmatpush2.msra.mxu0 0.0
    %951 = vmatprep.subr.mxu0 0.0
    %952 = vmatpush2.msra.mxu0 0.0
    %953 = vmatprep.subr.mxu0 0.0
    %954 = vmatpush2.msra.mxu0 0.0
    %955 = vmatprep.subr.mxu0 0.0
    %956 = vmatpush2.msra.mxu0 0.0
    %957 = vmatprep.subr.mxu0 0.0
    %958 = vmatpush2.msra.mxu0 0.0
    %959 = vmatprep.subr.mxu0 0.0
    %960 = vmatpush2.msra.mxu0 0.0
    %961 = vmatprep.subr.mxu0 0.0
    %962 = vmatpush2.msra.mxu0 0.0
    %963 = vmatprep.subr.mxu0 0.0
    %964 = vmatpush2.msra.mxu0 0.0
    %965 = vmatprep.mubr.f32.mxu0 0.0
    %966 = vmatmul.mubr.f32.gmra.mxu0 %v896
    %v967 = vpop.f32.mrf.mxu0
    %v968 = vadd.f32 0.0, %v967
    %v969 = vpop.f32.mrf.mxu0
    %970 = vmatprep.mubr.f32.mxu0 0.0
    %971 = vmatmul.mubr.f32.gmra.mxu0 %v899
    %v972 = vpop.f32.mrf.mxu0
    %v973 = vadd.f32 0.0, %v972
    %v974 = vpop.f32.mrf.mxu0
    %975 = vdwg.mxu0
    %v977 = vsel %vm202, %v968, 0
    %v980 = vsel %vm202, %v973, 0
    %982 = vmatprep.subr.mxu0 0.0
    %983 = vmatpush1.msra.mxu0 0.0
    %984 = vmatprep.subr.mxu0 0.0
    %985 = vmatpush1.msra.mxu0 0.0
    %986 = vmatprep.subr.mxu0 0.0
    %987 = vmatpush1.msra.mxu0 0.0
    %988 = vmatprep.subr.mxu0 0.0
    %989 = vmatpush1.msra.mxu0 0.0
    %990 = vmatprep.subr.mxu0 0.0
    %991 = vmatpush1.msra.mxu0 0.0
    %992 = vmatprep.subr.mxu0 0.0
    %993 = vmatpush1.msra.mxu0 0.0
    %994 = vmatprep.subr.mxu0 0.0
    %995 = vmatpush1.msra.mxu0 0.0
    %996 = vmatprep.subr.mxu0 0.0
    %997 = vmatpush1.msra.mxu0 0.0
    %998 = vmatprep.subr.mxu0 0.0
    %999 = vmatpush1.msra.mxu0 0.0
    %1000 = vmatprep.subr.mxu0 0.0
    %1001 = vmatpush1.msra.mxu0 0.0
    %1002 = vmatprep.subr.mxu0 0.0
    %1003 = vmatpush1.msra.mxu0 0.0
    %1004 = vmatprep.subr.mxu0 0.0
    %1005 = vmatpush1.msra.mxu0 0.0
    %1006 = vmatprep.subr.mxu0 0.0
    %1007 = vmatpush1.msra.mxu0 0.0
    %1008 = vmatprep.subr.mxu0 0.0
    %1009 = vmatpush1.msra.mxu0 0.0
    %1010 = vmatprep.subr.mxu0 0.0
    %1011 = vmatpush1.msra.mxu0 0.0
    %1012 = vmatprep.subr.mxu0 0.0
    %1013 = vmatpush1.msra.mxu0 %v194
    %1014 = vmatprep.subr.mxu0 0.0
    %1015 = vmatpush2.msra.mxu0 0.0
    %1016 = vmatprep.subr.mxu0 0.0
    %1017 = vmatpush2.msra.mxu0 0.0
    %1018 = vmatprep.subr.mxu0 0.0
    %1019 = vmatpush2.msra.mxu0 0.0
    %1020 = vmatprep.subr.mxu0 0.0
    %1021 = vmatpush2.msra.mxu0 0.0
    %1022 = vmatprep.subr.mxu0 0.0
    %1023 = vmatpush2.msra.mxu0 0.0
    %1024 = vmatprep.subr.mxu0 0.0
    %1025 = vmatpush2.msra.mxu0 0.0
    %1026 = vmatprep.subr.mxu0 0.0
    %1027 = vmatpush2.msra.mxu0 0.0
    %1028 = vmatprep.subr.mxu0 0.0
    %1029 = vmatpush2.msra.mxu0 0.0
    %1030 = vmatprep.subr.mxu0 0.0
    %1031 = vmatpush2.msra.mxu0 0.0
    %1032 = vmatprep.subr.mxu0 0.0
    %1033 = vmatpush2.msra.mxu0 0.0
    %1034 = vmatprep.subr.mxu0 0.0
    %1035 = vmatpush2.msra.mxu0 0.0
    %1036 = vmatprep.subr.mxu0 0.0
    %1037 = vmatpush2.msra.mxu0 0.0
    %1038 = vmatprep.subr.mxu0 0.0
    %1039 = vmatpush2.msra.mxu0 0.0
    %1040 = vmatprep.subr.mxu0 0.0
    %1041 = vmatpush2.msra.mxu0 0.0
    %1042 = vmatprep.subr.mxu0 0.0
    %1043 = vmatpush2.msra.mxu0 0.0
    %1044 = vmatprep.subr.mxu0 0.0
    %1045 = vmatpush2.msra.mxu0 0.0
    %1046 = vmatprep.mubr.f32.mxu0 0.0
    %1047 = vmatmul.mubr.f32.gmra.mxu0 %v977
    %v1048 = vpop.f32.mrf.mxu0
    %v1049 = vadd.f32 0.0, %v1048
    %v1050 = vpop.f32.mrf.mxu0
    %1051 = vmatprep.mubr.f32.mxu0 0.0
    %1052 = vmatmul.mubr.f32.gmra.mxu0 %v980
    %v1053 = vpop.f32.mrf.mxu0
    %v1054 = vadd.f32 0.0, %v1053
    %v1055 = vpop.f32.mrf.mxu0
    %1056 = vdwg.mxu0
    %v1057 = vadd.f32 %v762, %v1049
    %v1058 = vadd.f32 %v767, %v1054
    %1059 = vrot.lane.b32.xlu0 %v182, 104
    %v1060 = vpop.permute.xlu0 %1059
    %1061 = vrot.lane.b32.xlu0 %v187, 104
    %v1062 = vpop.permute.xlu0 %1061
    %1063 = vrot.lane.b32.xlu0 %v182, 72
    %v1064 = vpop.permute.xlu0 %1063
    %1065 = vrot.lane.b32.xlu0 %v187, 72
    %v1066 = vpop.permute.xlu0 %1065
    %v1067 = vsel %vm202, %v1060, 0
    %v1069 = vsel %vm202, %v1062, 0
    %v1071 = vsel %vm202, %v1064, 0
    %v1073 = vsel %vm202, %v1066, 0
    %1075 = vmatprep.subr.mxu0 0.0
    %1076 = vmatpush1.xpose.msra.mxu0 0.0
    %1077 = vmatprep.subr.mxu0 0.0
    %1078 = vmatpush1.xpose.msra.mxu0 0.0
    %1079 = vmatprep.subr.mxu0 0.0
    %1080 = vmatpush1.xpose.msra.mxu0 0.0
    %1081 = vmatprep.subr.mxu0 0.0
    %1082 = vmatpush1.xpose.msra.mxu0 0.0
    %1083 = vmatprep.subr.mxu0 0.0
    %1084 = vmatpush1.xpose.msra.mxu0 0.0
    %1085 = vmatprep.subr.mxu0 0.0
    %1086 = vmatpush1.xpose.msra.mxu0 0.0
    %1087 = vmatprep.subr.mxu0 0.0
    %1088 = vmatpush1.xpose.msra.mxu0 0.0
    %1089 = vmatprep.subr.mxu0 0.0
    %1090 = vmatpush1.xpose.msra.mxu0 0.0
    %1091 = vmatprep.subr.mxu0 0.0
    %1092 = vmatpush1.xpose.msra.mxu0 0.0
    %1093 = vmatprep.subr.mxu0 0.0
    %1094 = vmatpush1.xpose.msra.mxu0 0.0
    %1095 = vmatprep.subr.mxu0 0.0
    %1096 = vmatpush1.xpose.msra.mxu0 0.0
    %1097 = vmatprep.subr.mxu0 0.0
    %1098 = vmatpush1.xpose.msra.mxu0 0.0
    %1099 = vmatprep.subr.mxu0 0.0
    %1100 = vmatpush1.xpose.msra.mxu0 0.0
    %1101 = vmatprep.subr.mxu0 0.0
    %1102 = vmatpush1.xpose.msra.mxu0 0.0
    %1103 = vmatprep.subr.mxu0 0.0
    %1104 = vmatpush1.xpose.msra.mxu0 %v1073
    %1105 = vmatprep.subr.mxu0 0.0
    %1106 = vmatpush1.xpose.msra.mxu0 %v1071
    %1107 = vmatprep.subr.mxu0 0.0
    %1108 = vmatpush2.xpose.msra.mxu0 0.0
    %1109 = vmatprep.subr.mxu0 0.0
    %1110 = vmatpush2.xpose.msra.mxu0 0.0
    %1111 = vmatprep.subr.mxu0 0.0
    %1112 = vmatpush2.xpose.msra.mxu0 0.0
    %1113 = vmatprep.subr.mxu0 0.0
    %1114 = vmatpush2.xpose.msra.mxu0 0.0
    %1115 = vmatprep.subr.mxu0 0.0
    %1116 = vmatpush2.xpose.msra.mxu0 0.0
    %1117 = vmatprep.subr.mxu0 0.0
    %1118 = vmatpush2.xpose.msra.mxu0 0.0
    %1119 = vmatprep.subr.mxu0 0.0
    %1120 = vmatpush2.xpose.msra.mxu0 0.0
    %1121 = vmatprep.subr.mxu0 0.0
    %1122 = vmatpush2.xpose.msra.mxu0 0.0
    %1123 = vmatprep.subr.mxu0 0.0
    %1124 = vmatpush2.xpose.msra.mxu0 0.0
    %1125 = vmatprep.subr.mxu0 0.0
    %1126 = vmatpush2.xpose.msra.mxu0 0.0
    %1127 = vmatprep.subr.mxu0 0.0
    %1128 = vmatpush2.xpose.msra.mxu0 0.0
    %1129 = vmatprep.subr.mxu0 0.0
    %1130 = vmatpush2.xpose.msra.mxu0 0.0
    %1131 = vmatprep.subr.mxu0 0.0
    %1132 = vmatpush2.xpose.msra.mxu0 0.0
    %1133 = vmatprep.subr.mxu0 0.0
    %1134 = vmatpush2.xpose.msra.mxu0 0.0
    %1135 = vmatprep.subr.mxu0 0.0
    %1136 = vmatpush2.xpose.msra.mxu0 0.0
    %1137 = vmatprep.subr.mxu0 0.0
    %1138 = vmatpush2.xpose.msra.mxu0 0.0
    %1139 = vmatprep.mubr.f32.mxu0 0.0
    %1140 = vmatmul.mubr.f32.gmra.mxu0 %v1067
    %v1141 = vpop.f32.mrf.mxu0
    %v1142 = vadd.f32 %v190, %v1141
    %v1143 = vpop.f32.mrf.mxu0
    %1144 = vmatprep.mubr.f32.mxu0 0.0
    %1145 = vmatmul.mubr.f32.gmra.mxu0 %v1069
    %v1146 = vpop.f32.mrf.mxu0
    %v1147 = vadd.f32 %v191, %v1146
    %v1148 = vpop.f32.mrf.mxu0
    %1149 = vdwg.mxu0
    %v1150 = vsel %vm286, %v1142, -inf
    %1151 = vmax.xlane.f32.xlu0 %v1150
    %v1152 = vpop.xlane.xlu0 %1151
    %v1153 = vsel %vm286, %v1147, -inf
    %1154 = vmax.xlane.f32.xlu0 %v1153
    %v1155 = vpop.xlane.xlu0 %1154
    %v1156 = vsub.f32 %v1142, %v1152
    %v1157 = vsub.f32 %v1147, %v1155
    %v1158 = vmul.f32 %v1156, 1.442695
    %v1159 = vpow.pop %v1158
    %v1160 = vmul.f32 %v1157, 1.442695
    %v1161 = vpow.pop %v1160
    %v1162 = vsel %vm286, %v1159, 0.0
    %1163 = vadd.xlane.f32.xlu0 %v1162
    %v1164 = vpop.xlane.xlu0 %1163
    %v1165 = vsel %vm286, %v1161, 0.0
    %1166 = vadd.xlane.f32.xlu0 %v1165
    %v1167 = vpop.xlane.xlu0 %1166
    %v1168 = vrcp.pop %v1164
    %v1169 = vrcp.pop %v1167
    %v1170 = vmul.f32 %v1164, %v1168
    %v1171 = vmul.f32 %v1167, %v1169
    %v1172 = vsub.f32 2.0, %v1170
    %v1173 = vsub.f32 2.0, %v1171
    %v1174 = vmul.f32 %v1168, %v1172
    %v1175 = vmul.f32 %v1169, %v1173
    %v1176 = vmul.f32 %v1159, %v1174
    %v1177 = vmul.f32 %v1161, %v1175
    %1178 = vrot.lane.b32.xlu0 %v182, 40
    %v1179 = vpop.permute.xlu0 %1178
    %1180 = vrot.lane.b32.xlu0 %v187, 40
    %v1181 = vpop.permute.xlu0 %1180
    %v1185 = vsel %vm286, %v1176, 0
    %v1188 = vsel %vm286, %v1177, 0
    %1190 = vmatprep.subr.mxu0 0.0
    %1191 = vmatpush1.msra.mxu0 0.0
    %1192 = vmatprep.subr.mxu0 0.0
    %1193 = vmatpush1.msra.mxu0 0.0
    %1194 = vmatprep.subr.mxu0 0.0
    %1195 = vmatpush1.msra.mxu0 0.0
    %1196 = vmatprep.subr.mxu0 0.0
    %1197 = vmatpush1.msra.mxu0 0.0
    %1198 = vmatprep.subr.mxu0 0.0
    %1199 = vmatpush1.msra.mxu0 0.0
    %1200 = vmatprep.subr.mxu0 0.0
    %1201 = vmatpush1.msra.mxu0 0.0
    %1202 = vmatprep.subr.mxu0 0.0
    %1203 = vmatpush1.msra.mxu0 0.0
    %1204 = vmatprep.subr.mxu0 0.0
    %1205 = vmatpush1.msra.mxu0 0.0
    %1206 = vmatprep.subr.mxu0 0.0
    %1207 = vmatpush1.msra.mxu0 0.0
    %1208 = vmatprep.subr.mxu0 0.0
    %1209 = vmatpush1.msra.mxu0 0.0
    %1210 = vmatprep.subr.mxu0 0.0
    %1211 = vmatpush1.msra.mxu0 0.0
    %1212 = vmatprep.subr.mxu0 0.0
    %1213 = vmatpush1.msra.mxu0 0.0
    %1214 = vmatprep.subr.mxu0 0.0
    %1215 = vmatpush1.msra.mxu0 0.0
    %1216 = vmatprep.subr.mxu0 0.0
    %1217 = vmatpush1.msra.mxu0 0.0
    %1218 = vmatprep.subr.mxu0 0.0
    %1219 = vmatpush1.msra.mxu0 %v1181
    %1220 = vmatprep.subr.mxu0 0.0
    %1221 = vmatpush1.msra.mxu0 %v1179
    %1222 = vmatprep.subr.mxu0 0.0
    %1223 = vmatpush2.msra.mxu0 0.0
    %1224 = vmatprep.subr.mxu0 0.0
    %1225 = vmatpush2.msra.mxu0 0.0
    %1226 = vmatprep.subr.mxu0 0.0
    %1227 = vmatpush2.msra.mxu0 0.0
    %1228 = vmatprep.subr.mxu0 0.0
    %1229 = vmatpush2.msra.mxu0 0.0
    %1230 = vmatprep.subr.mxu0 0.0
    %1231 = vmatpush2.msra.mxu0 0.0
    %1232 = vmatprep.subr.mxu0 0.0
    %1233 = vmatpush2.msra.mxu0 0.0
    %1234 = vmatprep.subr.mxu0 0.0
    %1235 = vmatpush2.msra.mxu0 0.0
    %1236 = vmatprep.subr.mxu0 0.0
    %1237 = vmatpush2.msra.mxu0 0.0
    %1238 = vmatprep.subr.mxu0 0.0
    %1239 = vmatpush2.msra.mxu0 0.0
    %1240 = vmatprep.subr.mxu0 0.0
    %1241 = vmatpush2.msra.mxu0 0.0
    %1242 = vmatprep.subr.mxu0 0.0
    %1243 = vmatpush2.msra.mxu0 0.0
    %1244 = vmatprep.subr.mxu0 0.0
    %1245 = vmatpush2.msra.mxu0 0.0
    %1246 = vmatprep.subr.mxu0 0.0
    %1247 = vmatpush2.msra.mxu0 0.0
    %1248 = vmatprep.subr.mxu0 0.0
    %1249 = vmatpush2.msra.mxu0 0.0
    %1250 = vmatprep.subr.mxu0 0.0
    %1251 = vmatpush2.msra.mxu0 0.0
    %1252 = vmatprep.subr.mxu0 0.0
    %1253 = vmatpush2.msra.mxu0 0.0
    %1254 = vmatprep.mubr.f32.mxu0 0.0
    %1255 = vmatmul.mubr.f32.gmra.mxu0 %v1185
    %v1256 = vpop.f32.mrf.mxu0
    %v1257 = vadd.f32 0.0, %v1256
    %v1258 = vpop.f32.mrf.mxu0
    %1259 = vmatprep.mubr.f32.mxu0 0.0
    %1260 = vmatmul.mubr.f32.gmra.mxu0 %v1188
    %v1261 = vpop.f32.mrf.mxu0
    %v1262 = vadd.f32 0.0, %v1261
    %v1263 = vpop.f32.mrf.mxu0
    %1264 = vdwg.mxu0
    %v1266 = vsel %vm202, %v1257, 0
    %v1269 = vsel %vm202, %v1262, 0
    %1271 = vmatprep.subr.mxu0 0.0
    %1272 = vmatpush1.msra.mxu0 0.0
    %1273 = vmatprep.subr.mxu0 0.0
    %1274 = vmatpush1.msra.mxu0 0.0
    %1275 = vmatprep.subr.mxu0 0.0
    %1276 = vmatpush1.msra.mxu0 0.0
    %1277 = vmatprep.subr.mxu0 0.0
    %1278 = vmatpush1.msra.mxu0 0.0
    %1279 = vmatprep.subr.mxu0 0.0
    %1280 = vmatpush1.msra.mxu0 0.0
    %1281 = vmatprep.subr.mxu0 0.0
    %1282 = vmatpush1.msra.mxu0 0.0
    %1283 = vmatprep.subr.mxu0 0.0
    %1284 = vmatpush1.msra.mxu0 0.0
    %1285 = vmatprep.subr.mxu0 0.0
    %1286 = vmatpush1.msra.mxu0 0.0
    %1287 = vmatprep.subr.mxu0 0.0
    %1288 = vmatpush1.msra.mxu0 0.0
    %1289 = vmatprep.subr.mxu0 0.0
    %1290 = vmatpush1.msra.mxu0 0.0
    %1291 = vmatprep.subr.mxu0 0.0
    %1292 = vmatpush1.msra.mxu0 0.0
    %1293 = vmatprep.subr.mxu0 0.0
    %1294 = vmatpush1.msra.mxu0 0.0
    %1295 = vmatprep.subr.mxu0 0.0
    %1296 = vmatpush1.msra.mxu0 0.0
    %1297 = vmatprep.subr.mxu0 0.0
    %1298 = vmatpush1.msra.mxu0 0.0
    %1299 = vmatprep.subr.mxu0 0.0
    %1300 = vmatpush1.msra.mxu0 0.0
    %1301 = vmatprep.subr.mxu0 0.0
    %1302 = vmatpush1.msra.mxu0 %v195
    %1303 = vmatprep.subr.mxu0 0.0
    %1304 = vmatpush2.msra.mxu0 0.0
    %1305 = vmatprep.subr.mxu0 0.0
    %1306 = vmatpush2.msra.mxu0 0.0
    %1307 = vmatprep.subr.mxu0 0.0
    %1308 = vmatpush2.msra.mxu0 0.0
    %1309 = vmatprep.subr.mxu0 0.0
    %1310 = vmatpush2.msra.mxu0 0.0
    %1311 = vmatprep.subr.mxu0 0.0
    %1312 = vmatpush2.msra.mxu0 0.0
    %1313 = vmatprep.subr.mxu0 0.0
    %1314 = vmatpush2.msra.mxu0 0.0
    %1315 = vmatprep.subr.mxu0 0.0
    %1316 = vmatpush2.msra.mxu0 0.0
    %1317 = vmatprep.subr.mxu0 0.0
    %1318 = vmatpush2.msra.mxu0 0.0
    %1319 = vmatprep.subr.mxu0 0.0
    %1320 = vmatpush2.msra.mxu0 0.0
    %1321 = vmatprep.subr.mxu0 0.0
    %1322 = vmatpush2.msra.mxu0 0.0
    %1323 = vmatprep.subr.mxu0 0.0
    %1324 = vmatpush2.msra.mxu0 0.0
    %1325 = vmatprep.subr.mxu0 0.0
    %1326 = vmatpush2.msra.mxu0 0.0
    %1327 = vmatprep.subr.mxu0 0.0
    %1328 = vmatpush2.msra.mxu0 0.0
    %1329 = vmatprep.subr.mxu0 0.0
    %1330 = vmatpush2.msra.mxu0 0.0
    %1331 = vmatprep.subr.mxu0 0.0
    %1332 = vmatpush2.msra.mxu0 0.0
    %1333 = vmatprep.subr.mxu0 0.0
    %1334 = vmatpush2.msra.mxu0 0.0
    %1335 = vmatprep.mubr.f32.mxu0 0.0
    %1336 = vmatmul.mubr.f32.gmra.mxu0 %v1266
    %v1337 = vpop.f32.mrf.mxu0
    %v1338 = vadd.f32 0.0, %v1337
    %v1339 = vpop.f32.mrf.mxu0
    %1340 = vmatprep.mubr.f32.mxu0 0.0
    %1341 = vmatmul.mubr.f32.gmra.mxu0 %v1269
    %v1342 = vpop.f32.mrf.mxu0
    %v1343 = vadd.f32 0.0, %v1342
    %v1344 = vpop.f32.mrf.mxu0
    %1345 = vdwg.mxu0
    %v1346 = vadd.f32 %v1057, %v1338
    %v1347 = vadd.f32 %v1058, %v1343
    %v1348 = vlaneseq
    %v1349 = vshrl.u32 %v1348, 7
    %v1350 = vsub.s32 3, %v1349
    %v1351 = vrot.slane %v56, %v1350
    %v1352 = vadd.f32 %v1346, %v1351
    %v1353 = vadd.f32 %v1347, %v1351
    %v1354 = vadd.f32 %v1352, %v54
    %v1355 = vadd.f32 %v1353, %v55
    %v1356 = vsel %vm57, %v1354, 0.0
    %1357 = vadd.xlane.f32.xlu0 %v1356
    %v1358 = vpop.xlane.xlu0 %1357
    %v1359 = vsel %vm57, %v1355, 0.0
    %1360 = vadd.xlane.f32.xlu0 %v1359
    %v1361 = vpop.xlane.xlu0 %1360
    %v1362 = vmul.f32 %v1358, %v64
    %v1363 = vmul.f32 %v1361, %v64
    %v1364 = vmul.f32 %v1354, %v1354
    %v1365 = vmul.f32 %v1355, %v1355
    %v1366 = vsel %vm57, %v1364, 0.0
    %1367 = vadd.xlane.f32.xlu0 %v1366
    %v1368 = vpop.xlane.xlu0 %1367
    %v1369 = vsel %vm57, %v1365, 0.0
    %1370 = vadd.xlane.f32.xlu0 %v1369
    %v1371 = vpop.xlane.xlu0 %1370
    %v1372 = vmul.f32 %v1368, %v64
    %v1373 = vmul.f32 %v1371, %v64
    %v1374 = vmul.f32 %v1362, %v1362
    %v1375 = vmul.f32 %v1363, %v1363
    %v1376 = vsub.f32 %v1372, %v1374
    %v1377 = vsub.f32 %v1373, %v1375
    %v1378 = vsub.f32 %v1354, %v1362
    %v1379 = vsub.f32 %v1355, %v1363
    %v1380 = vadd.f32 %v1376, 1e-05
    %v1381 = vadd.f32 %v1377, 1e-05
    %v1382 = vrsqrt.pop %v1380
    %v1383 = vrsqrt.pop %v1381
    %v1384 = vmul.f32 %v1378, %v1382
    %v1385 = vmul.f32 %v1379, %v1383
    %v1386 = vlaneseq
    %v1387 = vshrl.u32 %v1386, 7
    %v1388 = vsub.s32 4, %v1387
    %v1389 = vrot.slane %v56, %v1388
    %v1390 = vmul.f32 %v1384, %v1389
    %v1391 = vmul.f32 %v1385, %v1389
    %v1392 = vlaneseq
    %v1393 = vshrl.u32 %v1392, 7
    %v1394 = vsub.s32 5, %v1393
    %v1395 = vrot.slane %v56, %v1394
    %v1396 = vadd.f32 %v1390, %v1395
    %v1397 = vadd.f32 %v1391, %v1395
    %v1398 = vld [vmem:[#allocation7 + $0x40] sm:$0xff]
    %v1399 = vld [vmem:[#allocation7 + $0x48] sm:$0xff]
    %v1400 = vld [vmem:[#allocation7 + $0x50] sm:$0xff]
    %v1401 = vld [vmem:[#allocation7 + $0x58] sm:$0xff]
    %v1402 = vlaneseq
    %v1403 = vshrl.u32 %v1402, 7
    %v1404 = vsub.s32 6, %v1403
    %v1405 = vrot.slane %v56, %v1404
    %v1407 = vsel %vm57, %v1396, 0
    %v1410 = vsel %vm57, %v1397, 0
    %1412 = vmatprep.subr.mxu0 0.0
    %1413 = vmatpush1.msra.mxu0 0.0
    %1414 = vmatprep.subr.mxu0 0.0
    %1415 = vmatpush1.msra.mxu0 0.0
    %1416 = vmatprep.subr.mxu0 0.0
    %1417 = vmatpush1.msra.mxu0 0.0
    %1418 = vmatprep.subr.mxu0 0.0
    %1419 = vmatpush1.msra.mxu0 0.0
    %1420 = vmatprep.subr.mxu0 0.0
    %1421 = vmatpush1.msra.mxu0 0.0
    %1422 = vmatprep.subr.mxu0 0.0
    %1423 = vmatpush1.msra.mxu0 0.0
    %1424 = vmatprep.subr.mxu0 0.0
    %1425 = vmatpush1.msra.mxu0 0.0
    %1426 = vmatprep.subr.mxu0 0.0
    %1427 = vmatpush1.msra.mxu0 0.0
    %1428 = vmatprep.subr.mxu0 0.0
    %1429 = vmatpush1.msra.mxu0 0.0
    %1430 = vmatprep.subr.mxu0 0.0
    %1431 = vmatpush1.msra.mxu0 0.0
    %1432 = vmatprep.subr.mxu0 0.0
    %1433 = vmatpush1.msra.mxu0 0.0
    %1434 = vmatprep.subr.mxu0 0.0
    %1435 = vmatpush1.msra.mxu0 0.0
    %1436 = vmatprep.subr.mxu0 0.0
    %1437 = vmatpush1.msra.mxu0 %v1401
    %1438 = vmatprep.subr.mxu0 0.0
    %1439 = vmatpush1.msra.mxu0 %v1400
    %1440 = vmatprep.subr.mxu0 0.0
    %1441 = vmatpush1.msra.mxu0 %v1399
    %1442 = vmatprep.subr.mxu0 0.0
    %1443 = vmatpush1.msra.mxu0 %v1398
    %1444 = vmatprep.subr.mxu0 0.0
    %1445 = vmatpush2.msra.mxu0 0.0
    %1446 = vmatprep.subr.mxu0 0.0
    %1447 = vmatpush2.msra.mxu0 0.0
    %1448 = vmatprep.subr.mxu0 0.0
    %1449 = vmatpush2.msra.mxu0 0.0
    %1450 = vmatprep.subr.mxu0 0.0
    %1451 = vmatpush2.msra.mxu0 0.0
    %1452 = vmatprep.subr.mxu0 0.0
    %1453 = vmatpush2.msra.mxu0 0.0
    %1454 = vmatprep.subr.mxu0 0.0
    %1455 = vmatpush2.msra.mxu0 0.0
    %1456 = vmatprep.subr.mxu0 0.0
    %1457 = vmatpush2.msra.mxu0 0.0
    %1458 = vmatprep.subr.mxu0 0.0
    %1459 = vmatpush2.msra.mxu0 0.0
    %1460 = vmatprep.subr.mxu0 0.0
    %1461 = vmatpush2.msra.mxu0 0.0
    %1462 = vmatprep.subr.mxu0 0.0
    %1463 = vmatpush2.msra.mxu0 0.0
    %1464 = vmatprep.subr.mxu0 0.0
    %1465 = vmatpush2.msra.mxu0 0.0
    %1466 = vmatprep.subr.mxu0 0.0
    %1467 = vmatpush2.msra.mxu0 0.0
    %1468 = vmatprep.subr.mxu0 0.0
    %1469 = vmatpush2.msra.mxu0 0.0
    %1470 = vmatprep.subr.mxu0 0.0
    %1471 = vmatpush2.msra.mxu0 0.0
    %1472 = vmatprep.subr.mxu0 0.0
    %1473 = vmatpush2.msra.mxu0 0.0
    %1474 = vmatprep.subr.mxu0 0.0
    %1475 = vmatpush2.msra.mxu0 0.0
    %1476 = vmatprep.mubr.f32.mxu0 0.0
    %1477 = vmatmul.mubr.f32.gmra.mxu0 %v1407
    %v1478 = vpop.f32.mrf.mxu0
    %v1479 = vadd.f32 %v1405, %v1478
    %v1480 = vpop.f32.mrf.mxu0
    %1481 = vmatprep.mubr.f32.mxu0 0.0
    %1482 = vmatmul.mubr.f32.gmra.mxu0 %v1410
    %v1483 = vpop.f32.mrf.mxu0
    %v1484 = vadd.f32 %v1405, %v1483
    %v1485 = vpop.f32.mrf.mxu0
    %1486 = vdwg.mxu0
    %v1487 = vmul.f32 %v1479, 0.5
    %v1488 = vmul.f32 %v1484, 0.5
    %v1489 = vmul.f32 %v1479, 0.70710677
    %v1490 = vmul.f32 %v1484, 0.70710677
    %v1491 = verf.f32.pop %v1489
    %v1492 = verf.f32.pop %v1490
    %v1493 = vadd.f32 %v1491, 1.0
    %v1494 = vadd.f32 %v1492, 1.0
    %v1495 = vmul.f32 %v1487, %v1493
    %v1496 = vmul.f32 %v1488, %v1494
    %v1497 = vld [vmem:[#allocation7 + $0x60] sm:$0xff]
    %v1498 = vld [vmem:[#allocation7 + $0x68] sm:$0xff]
    %v1499 = vld [vmem:[#allocation7 + $0x70] sm:$0xff]
    %v1500 = vld [vmem:[#allocation7 + $0x78] sm:$0xff]
    %v1501 = vld [vmem:[#allocation7 + $0x80] sm:$0xff]
    %v1502 = vld [vmem:[#allocation7 + $0x88] sm:$0xff]
    %v1503 = vld [vmem:[#allocation7 + $0x90] sm:$0xff]
    %v1504 = vld [vmem:[#allocation7 + $0x98] sm:$0xff]
    %v1505 = vlaneseq
    %v1506 = vshrl.u32 %v1505, 7
    %v1507 = vsub.s32 7, %v1506
    %v1508 = vrot.slane %v56, %v1507
    %vm1509 = vcmask 523264
    %v1511 = vsel %vm1509, %v1495, 0
    %v1514 = vsel %vm1509, %v1496, 0
    %1516 = vmatprep.subr.mxu0 0.0
    %1517 = vmatpush1.msra.mxu0 0.0
    %1518 = vmatprep.subr.mxu0 0.0
    %1519 = vmatpush1.msra.mxu0 0.0
    %1520 = vmatprep.subr.mxu0 0.0
    %1521 = vmatpush1.msra.mxu0 0.0
    %1522 = vmatprep.subr.mxu0 0.0
    %1523 = vmatpush1.msra.mxu0 0.0
    %1524 = vmatprep.subr.mxu0 0.0
    %1525 = vmatpush1.msra.mxu0 0.0
    %1526 = vmatprep.subr.mxu0 0.0
    %1527 = vmatpush1.msra.mxu0 0.0
    %1528 = vmatprep.subr.mxu0 0.0
    %1529 = vmatpush1.msra.mxu0 0.0
    %1530 = vmatprep.subr.mxu0 0.0
    %1531 = vmatpush1.msra.mxu0 0.0
    %1532 = vmatprep.subr.mxu0 0.0
    %1533 = vmatpush1.msra.mxu0 %v1504
    %1534 = vmatprep.subr.mxu0 0.0
    %1535 = vmatpush1.msra.mxu0 %v1503
    %1536 = vmatprep.subr.mxu0 0.0
    %1537 = vmatpush1.msra.mxu0 %v1502
    %1538 = vmatprep.subr.mxu0 0.0
    %1539 = vmatpush1.msra.mxu0 %v1501
    %1540 = vmatprep.subr.mxu0 0.0
    %1541 = vmatpush1.msra.mxu0 %v1500
    %1542 = vmatprep.subr.mxu0 0.0
    %1543 = vmatpush1.msra.mxu0 %v1499
    %1544 = vmatprep.subr.mxu0 0.0
    %1545 = vmatpush1.msra.mxu0 %v1498
    %1546 = vmatprep.subr.mxu0 0.0
    %1547 = vmatpush1.msra.mxu0 %v1497
    %1548 = vmatprep.subr.mxu0 0.0
    %1549 = vmatpush2.msra.mxu0 0.0
    %1550 = vmatprep.subr.mxu0 0.0
    %1551 = vmatpush2.msra.mxu0 0.0
    %1552 = vmatprep.subr.mxu0 0.0
    %1553 = vmatpush2.msra.mxu0 0.0
    %1554 = vmatprep.subr.mxu0 0.0
    %1555 = vmatpush2.msra.mxu0 0.0
    %1556 = vmatprep.subr.mxu0 0.0
    %1557 = vmatpush2.msra.mxu0 0.0
    %1558 = vmatprep.subr.mxu0 0.0
    %1559 = vmatpush2.msra.mxu0 0.0
    %1560 = vmatprep.subr.mxu0 0.0
    %1561 = vmatpush2.msra.mxu0 0.0
    %1562 = vmatprep.subr.mxu0 0.0
    %1563 = vmatpush2.msra.mxu0 0.0
    %1564 = vmatprep.subr.mxu0 0.0
    %1565 = vmatpush2.msra.mxu0 0.0
    %1566 = vmatprep.subr.mxu0 0.0
    %1567 = vmatpush2.msra.mxu0 0.0
    %1568 = vmatprep.subr.mxu0 0.0
    %1569 = vmatpush2.msra.mxu0 0.0
    %1570 = vmatprep.subr.mxu0 0.0
    %1571 = vmatpush2.msra.mxu0 0.0
    %1572 = vmatprep.subr.mxu0 0.0
    %1573 = vmatpush2.msra.mxu0 0.0
    %1574 = vmatprep.subr.mxu0 0.0
    %1575 = vmatpush2.msra.mxu0 0.0
    %1576 = vmatprep.subr.mxu0 0.0
    %1577 = vmatpush2.msra.mxu0 0.0
    %1578 = vmatprep.subr.mxu0 0.0
    %1579 = vmatpush2.msra.mxu0 0.0
    %1580 = vmatprep.mubr.f32.mxu0 0.0
    %1581 = vmatmul.mubr.f32.gmra.mxu0 %v1511
    %v1582 = vpop.f32.mrf.mxu0
    %v1583 = vadd.f32 %v1508, %v1582
    %v1584 = vpop.f32.mrf.mxu0
    %1585 = vmatprep.mubr.f32.mxu0 0.0
    %1586 = vmatmul.mubr.f32.gmra.mxu0 %v1514
    %v1587 = vpop.f32.mrf.mxu0
    %v1588 = vadd.f32 %v1508, %v1587
    %v1589 = vpop.f32.mrf.mxu0
    %1590 = vdwg.mxu0
    %v1591 = vadd.f32 %v1583, %v1354
    %v1592 = vadd.f32 %v1588, %v1355
    %1593 = vst.msk [vmem:[#allocation8] sm:$0xff] %vm57, %v1591
    %1594 = vst.msk [vmem:[#allocation8 + $0x8] sm:$0xff] %vm57, %v1592
    // Predicated region
    $region26: #{transformer_encoder_block.1} parent=1 // pred_check
      _
    $region27: #{transformer_encoder_block.1} parent=1 // pred_check_branch
      %1596 = sbr.rel (0) target = $region29
    $region28: #{transformer_encoder_block.1} parent=1 // pred_region
      %s1598 = ssub.s32 256, 256
      %1599 = vsyncadd [#allocation4], %s1598
      %s1600 = sshll.u32 [#allocation8], 4
      %s1601 = int_to_ptr.vmem [resolvable:$true] %s1600
      %1606 = dma.vmem_to_hbm [thread:$0]  %s1601, 256, %s3, [#allocation4], 128, 128, 8
    $region29: #{transformer_encoder_block.1} parent=1 // pred_fallthru
      _
    // Predicated region
    $region30: #{transformer_encoder_block.1} parent=1 // pred_check
      _
    $region31: #{transformer_encoder_block.1} parent=1 // pred_check_branch
      %1608 = sbr.rel (0) target = $region33
    $region32: #{transformer_encoder_block.1} parent=1 // pred_region
      %1609 = dma.done [#allocation4], 256
    $region33: #{transformer_encoder_block.1} parent=1 // pred_fallthru
      _
    %1610 = vsyncpa [#allocation3], 1
    %1611 = vsyncpa [#allocation6], 1
    %1612 = vsyncpa [#allocation4], 1

</llo_original>
